<compile_context>
chip_gen: v6e
topology: v6e:2x2x1
jax: 0.10.0
libtpu: 0.0.40
codegen_flags: <defaults>
</compile_context>

<pallas_src>
import jax
import jax.numpy as jnp
from jax import lax
from jax.experimental import pallas as pl
from jax.experimental.pallas import tpu as pltpu


def _make_gated_attention_kernel(n_true, tile_n, d):
    nt_dims = (((1,), (1,)), ((), ()))   # A @ B^T contraction (rhs transposed)

    def kernel(h_ref, wvu_ref, bvu_ref, ww_ref, wc_ref, bc_ref,
               yprob_ref, yhat_ref, s_ref, m_ref, l_ref,
               acc_sc):
        i = pl.program_id(0)

        @pl.when(i == 0)
        def _init():
            m_ref[...] = jnp.full_like(m_ref, -jnp.inf)
            l_ref[...] = jnp.zeros_like(l_ref)
            acc_sc[...] = jnp.zeros_like(acc_sc)

        # Zero-mask rows past the true bag length (partial last tile is read OOB by the DMA;
        # padded-row garbage must not reach the pooling matmul).  All-true for full tiles,
        # cost is hidden under the H tile DMA.
        rows = lax.broadcasted_iota(jnp.int32, (tile_n, 1), 0)
        h_f32 = jnp.where(i * tile_n + rows < n_true, h_ref[...], 0.0)   # (tile_n, L) f32
        h_bf = h_f32.astype(jnp.bfloat16)

        # Fused gating projection: one (tile_n, L) @ (L, 2D) bf16 matmul on the MXU, f32 accum.
        g = jnp.dot(h_bf, wvu_ref[...],
                    preferred_element_type=jnp.float32) + bvu_ref[...]
        gated = jnp.tanh(g[:, :d]) * jax.nn.sigmoid(g[:, d:])            # (tile_n, D) f32

        # Lane-dense attention logits: (1, D) @ (tile_n, D)^T -> (1, tile_n).
        s_row = lax.dot_general(ww_ref[...], gated, nt_dims,
                                preferred_element_type=jnp.float32)

        # Mask padded instances so they contribute nothing to the softmax.
        cols = lax.broadcasted_iota(jnp.int32, (1, tile_n), 1)
        s_row = jnp.where(i * tile_n + cols < n_true, s_row, -1e30)

        # Raw logits stream out per-tile (pipelined HBM writeback; normalized in XLA epilogue).
        s_ref[...] = s_row

        # Online softmax accumulation of M = softmax(A) @ H (f32 pooling dot).
        tile_max = jnp.max(s_row, axis=1, keepdims=True)                 # (1, 1)
        m_new = jnp.maximum(m_ref[...], tile_max)
        alpha = jnp.exp(m_ref[...] - m_new)
        p = jnp.exp(s_row - m_new)                                       # (1, tile_n)
        l_ref[...] = alpha * l_ref[...] + jnp.sum(p, axis=1, keepdims=True)
        acc_sc[...] = alpha * acc_sc[...] + jnp.dot(
            p, h_f32, preferred_element_type=jnp.float32)                # (1, L)
        m_ref[...] = m_new

        @pl.when(i == pl.num_programs(0) - 1)
        def _finalize():
            m_pool = acc_sc[...] / l_ref[...]                            # (1, L)
            y_logit = jnp.sum(m_pool * wc_ref[...], axis=1,
                              keepdims=True) + bc_ref[...]
            y_prob = jax.nn.sigmoid(y_logit)
            yprob_ref[...] = y_prob
            yhat_ref[...] = (y_prob >= 0.5).astype(jnp.float32)

    return kernel


def gated_attention_forward(x, params, tile_n=1024,
                            vmem_limit_bytes=48 * 1024 * 1024):
    """x: (1, N, L).  Returns (Y_prob (1,1), Y_hat (1,1), A (1,N)) like the module."""
    h = jnp.squeeze(x, axis=0).astype(jnp.float32)                       # (N, L)
    n, l = h.shape
    d = params["wv"].shape[1]

    # Clamp/align tile_n: a block never exceeds the bag, and multi-tile configs stay
    # lane-aligned (multiple of 128) for the lane-dense logit output block.
    if tile_n >= n:
        tile_n = n
    else:
        tile_n = max(128, (tile_n // 128) * 128)

    n_tiles = pl.cdiv(n, tile_n)
    n_pad = n_tiles * tile_n

    # Param packing / layout for the kernel (tiny, outside the hot loop).
    wvu = jnp.concatenate([params["wv"], params["wu"]], axis=1).astype(jnp.bfloat16)  # (L, 2D)
    bvu = jnp.concatenate([params["bv"], params["bu"]], axis=1).astype(jnp.float32)   # (1, 2D)
    ww_row = jnp.transpose(params["ww"]).astype(jnp.float32)                          # (1, D)
    wc_row = jnp.transpose(params["wc"]).astype(jnp.float32)                          # (1, L)
    bc = params["bc"].astype(jnp.float32)                                             # (1, 1)

    const = lambda shape: pl.BlockSpec(shape, lambda i: (0, 0))          # VMEM-resident block

    y_prob, y_hat, s_raw, m_fin, l_fin = pl.pallas_call(
        _make_gated_attention_kernel(n, tile_n, d),
        out_shape=(
            jax.ShapeDtypeStruct((1, 1), jnp.float32),                   # Y_prob
            jax.ShapeDtypeStruct((1, 1), jnp.float32),                   # Y_hat
            jax.ShapeDtypeStruct((1, n_pad), jnp.float32),               # raw attention logits
            jax.ShapeDtypeStruct((1, 1), jnp.float32),                   # global max m
            jax.ShapeDtypeStruct((1, 1), jnp.float32),                   # softmax denom l
        ),
        grid_spec=pltpu.PrefetchScalarGridSpec(
            num_scalar_prefetch=0,
            grid=(n_tiles,),
            in_specs=[
                pl.BlockSpec((tile_n, l), lambda i: (i, 0)),             # f32 H tile (pipelined)
                const((l, 2 * d)),                                       # fused Wv|Wu (bf16)
                const((1, 2 * d)),                                       # fused bv|bu
                const((1, d)),                                           # attention_weights W
                const((1, l)),                                           # classifier W
                const((1, 1)),                                           # classifier b
            ],
            out_specs=[
                const((1, 1)),                                           # Y_prob
                const((1, 1)),                                           # Y_hat
                pl.BlockSpec((1, tile_n), lambda i: (0, i)),             # logits (per-tile write)
                const((1, 1)),                                           # m (running max)
                const((1, 1)),                                           # l (running denom)
            ],
            scratch_shapes=[
                pltpu.VMEM((1, l), jnp.float32),                         # running sum p @ H
            ],
        ),
        compiler_params=pltpu.CompilerParams(
            dimension_semantics=("arbitrary",),                          # N is a reduction axis
            vmem_limit_bytes=vmem_limit_bytes),
    )(h, wvu, bvu, ww_row, wc_row, bc)

    # Tiny XLA epilogue: normalize the attention row (padded logits are -1e30 -> exp == 0,
    # and sliced away anyway).
    a = jnp.exp(s_raw[:, :n] - m_fin) / l_fin
    return y_prob, y_hat, a


def init_params(key, feats_size=512, d=128):
    """Deterministic init mirroring nn.Linear default: U(-1/sqrt(fan_in), 1/sqrt(fan_in))."""
    ks = jax.random.split(key, 8)

    def lin(kw, kb, fan_in, fan_out):
        bound = 1.0 / jnp.sqrt(fan_in)
        w = jax.random.uniform(kw, (fan_in, fan_out), jnp.float32, -bound, bound)
        b = jax.random.uniform(kb, (1, fan_out), jnp.float32, -bound, bound)
        return w, b

    wv, bv = lin(ks[0], ks[1], feats_size, d)
    wu, bu = lin(ks[2], ks[3], feats_size, d)
    ww, bw = lin(ks[4], ks[5], d, 1)
    wc, bc = lin(ks[6], ks[7], feats_size, 1)
    return dict(wv=wv, bv=bv, wu=wu, bu=bu, ww=ww, bw=bw, wc=wc, bc=bc)


def _reference_forward(x, p):
    h = jnp.squeeze(x, axis=0)
    a_v = jnp.tanh(h @ p["wv"] + p["bv"])
    a_u = jax.nn.sigmoid(h @ p["wu"] + p["bu"])
    a = (a_v * a_u) @ p["ww"] + p["bw"]
    a = jax.nn.softmax(a.T, axis=1)
    m = a @ h
    y_prob = jax.nn.sigmoid(m @ p["wc"] + p["bc"])
    y_hat = (y_prob >= 0.5).astype(jnp.float32)
    return y_prob, y_hat, a


if __name__ == "__main__":
    FEATS = 512   # self.L
    D = 128       # self.D
    N = 640       # instances in the bag (not a multiple of 256 -> exercises padding/mask)

    key = jax.random.PRNGKey(0)
    k_param, k_x = jax.random.split(key)
    params = init_params(k_param, FEATS, D)
    x = jax.random.normal(k_x, (1, N, FEATS), dtype=jnp.float32)

    # pure-f32 JAX reference (kernel's gating matmul is bf16 -> loose tolerance on Y_prob)
    y_prob_r, y_hat_r, a_r = _reference_forward(x, params)

    # exercise both the multi-tile (partial last block) and the single-tile path
    for tn in (256, 1024):
        y_prob, y_hat, a = gated_attention_forward(x, params, tile_n=tn)
        jax.block_until_ready((y_prob, y_hat, a))

        assert y_prob.shape == (1, 1) and y_hat.shape == (1, 1) and a.shape == (1, N)
        assert jnp.allclose(y_prob, y_prob_r, atol=2e-2)
        assert jnp.allclose(a, a_r, atol=1e-3)
        assert jnp.allclose(jnp.sum(a), 1.0, atol=1e-3)
        assert jnp.array_equal(y_hat, (y_prob >= 0.5).astype(jnp.float32))

    print("KERNEL_OK")
</pallas_src>

<mosaic_0001>
module attributes {stable_mosaic.version = 11 : i64} {
  func.func @kernel(%arg0: i32, %arg1: memref<256x512xf32, #tpu.memory_space<vmem>>, %arg2: memref<512x256xbf16, #tpu.memory_space<vmem>>, %arg3: memref<1x256xf32, #tpu.memory_space<vmem>>, %arg4: memref<1x128xf32, #tpu.memory_space<vmem>>, %arg5: memref<1x512xf32, #tpu.memory_space<vmem>>, %arg6: memref<1x1xf32, #tpu.memory_space<vmem>>, %arg7: memref<1x1xf32, #tpu.memory_space<vmem>>, %arg8: memref<1x1xf32, #tpu.memory_space<vmem>>, %arg9: memref<1x256xf32, #tpu.memory_space<vmem>>, %arg10: memref<1x1xf32, #tpu.memory_space<vmem>>, %arg11: memref<1x1xf32, #tpu.memory_space<vmem>>, %arg12: memref<1x512xf32, #tpu.memory_space<vmem>>) attributes {dimension_semantics = [#tpu.dimension_semantics<arbitrary>], iteration_bounds = array<i64: 3>, scalar_prefetch = 0 : i64, scratch_operands = 1 : i64, tpu.core_type = #tpu.core_type<tc>, window_params = [{transform_indices = @transform_0, window_bounds = array<i64: 256, 512>}, {pipeline_mode = #tpu.pipeline_mode<synchronous>, transform_indices = @transform_1, window_bounds = array<i64: 512, 256>}, {pipeline_mode = #tpu.pipeline_mode<synchronous>, transform_indices = @transform_2, window_bounds = array<i64: 1, 256>}, {pipeline_mode = #tpu.pipeline_mode<synchronous>, transform_indices = @transform_3, window_bounds = array<i64: 1, 128>}, {pipeline_mode = #tpu.pipeline_mode<synchronous>, transform_indices = @transform_4, window_bounds = array<i64: 1, 512>}, {pipeline_mode = #tpu.pipeline_mode<synchronous>, transform_indices = @transform_5, window_bounds = array<i64: 1, 1>}, {pipeline_mode = #tpu.pipeline_mode<synchronous>, transform_indices = @transform_6, window_bounds = array<i64: 1, 1>}, {pipeline_mode = #tpu.pipeline_mode<synchronous>, transform_indices = @transform_7, window_bounds = array<i64: 1, 1>}, {transform_indices = @transform_8, window_bounds = array<i64: 1, 256>}, {pipeline_mode = #tpu.pipeline_mode<synchronous>, transform_indices = @transform_9, window_bounds = array<i64: 1, 1>}, {pipeline_mode = #tpu.pipeline_mode<synchronous>, transform_indices = @transform_10, window_bounds = array<i64: 1, 1>}]} {
    %c0_i32 = arith.constant 0 : i32
    %0 = arith.cmpi eq, %arg0, %c0_i32 : i32
    %1 = arith.extui %0 : i1 to i32
    %c0_i32_0 = arith.constant 0 : i32
    %2 = arith.cmpi ne, %1, %c0_i32_0 : i32
    scf.if %2 {
      %cst_34 = arith.constant 0xFF800000 : f32
      %66 = vector.broadcast %cst_34 : f32 to vector<1x1xf32>
      %c0_35 = arith.constant 0 : index
      %c0_36 = arith.constant 0 : index
      %67 = vector.load %arg10[%c0_35, %c0_36] : memref<1x1xf32, #tpu.memory_space<vmem>>, vector<1x1xf32>
      tpu.vector_store %arg10[%c0_35, %c0_36], %66 {strides = array<i32>} : memref<1x1xf32, #tpu.memory_space<vmem>>, vector<1x1xf32>,
      %cst_37 = arith.constant 0.000000e+00 : f32
      %68 = vector.broadcast %cst_37 : f32 to vector<1x1xf32>
      %c0_38 = arith.constant 0 : index
      %c0_39 = arith.constant 0 : index
      %69 = vector.load %arg11[%c0_38, %c0_39] : memref<1x1xf32, #tpu.memory_space<vmem>>, vector<1x1xf32>
      tpu.vector_store %arg11[%c0_38, %c0_39], %68 {strides = array<i32>} : memref<1x1xf32, #tpu.memory_space<vmem>>, vector<1x1xf32>,
      %cst_40 = arith.constant 0.000000e+00 : f32
      %70 = vector.broadcast %cst_40 : f32 to vector<1x512xf32>
      %c0_41 = arith.constant 0 : index
      %c0_42 = arith.constant 0 : index
      %71 = vector.load %arg12[%c0_41, %c0_42] : memref<1x512xf32, #tpu.memory_space<vmem>>, vector<1x512xf32>
      tpu.vector_store %arg12[%c0_41, %c0_42], %70 {strides = array<i32>} : memref<1x512xf32, #tpu.memory_space<vmem>>, vector<1x512xf32>,
    } else {
    }
    %3 = tpu.iota {dimensions = array<i32: 0>} : vector<256x1xi32>
    %c256_i32 = arith.constant 256 : i32
    %4 = arith.muli %arg0, %c256_i32 : i32
    %5 = vector.broadcast %4 : i32 to vector<256x1xi32>
    %6 = arith.addi %5, %3 : vector<256x1xi32>
    %c640_i32 = arith.constant 640 : i32
    %7 = vector.broadcast %c640_i32 : i32 to vector<256x1xi32>
    %8 = arith.cmpi slt, %6, %7 : vector<256x1xi32>
    %c0 = arith.constant 0 : index
    %c0_1 = arith.constant 0 : index
    %9 = vector.load %arg1[%c0, %c0_1] : memref<256x512xf32, #tpu.memory_space<vmem>>, vector<256x512xf32>
    %cst = arith.constant 0.000000e+00 : f32
    %10 = vector.shape_cast %8 : vector<256x1xi1> to vector<256x1xi1>
    %11 = vector.broadcast %10 : vector<256x1xi1> to vector<256x512xi1>
    %12 = vector.broadcast %cst : f32 to vector<256x512xf32>
    %13 = arith.select %11, %9, %12 : vector<256x512xi1>, vector<256x512xf32>
    %14 = arith.truncf %13 : vector<256x512xf32> to vector<256x512xbf16>
    %c0_2 = arith.constant 0 : index
    %c0_3 = arith.constant 0 : index
    %15 = vector.load %arg2[%c0_2, %c0_3] : memref<512x256xbf16, #tpu.memory_space<vmem>>, vector<512x256xbf16>
    %cst_4 = arith.constant dense<0.000000e+00> : vector<256x256xf32>
    %16 = tpu.matmul %14, %15, %cst_4 {dimension_numbers = #tpu.dot_dimension_numbers<[1], [0], [0], [1], [0, 0, 1, 1], [], []>} : vector<256x512xbf16>, vector<512x256xbf16>, vector<256x256xf32> -> vector<256x256xf32>
    %c0_5 = arith.constant 0 : index
    %c0_6 = arith.constant 0 : index
    %17 = vector.load %arg3[%c0_5, %c0_6] : memref<1x256xf32, #tpu.memory_space<vmem>>, vector<1x256xf32>
    %18 = vector.broadcast %17 : vector<1x256xf32> to vector<256x256xf32>
    %19 = arith.addf %16, %18 : vector<256x256xf32>
    %20 = vector.extract_strided_slice %19 {offsets = [0, 0], sizes = [256, 128], strides = [1, 1]} : vector<256x256xf32> to vector<256x128xf32>
    %21 = math.tanh %20 : vector<256x128xf32>
    %22 = vector.extract_strided_slice %19 {offsets = [0, 128], sizes = [256, 128], strides = [1, 1]} : vector<256x256xf32> to vector<256x128xf32>
    %23 = arith.negf %22 : vector<256x128xf32>
    %24 = math.exp %23 : vector<256x128xf32>
    %cst_7 = arith.constant 1.000000e+00 : f32
    %25 = vector.broadcast %cst_7 : f32 to vector<256x128xf32>
    %26 = arith.addf %25, %24 : vector<256x128xf32>
    %27 = arith.divf %25, %26 : vector<256x128xf32>
    %28 = arith.mulf %21, %27 : vector<256x128xf32>
    %c0_8 = arith.constant 0 : index
    %c0_9 = arith.constant 0 : index
    %29 = vector.load %arg4[%c0_8, %c0_9] : memref<1x128xf32, #tpu.memory_space<vmem>>, vector<1x128xf32>
    %cst_10 = arith.constant dense<0.000000e+00> : vector<1x256xf32>
    %30 = tpu.matmul %29, %28, %cst_10 {dimension_numbers = #tpu.dot_dimension_numbers<[1], [1], [0], [0], [0, 0, 1, 0], [], []>} : vector<1x128xf32>, vector<256x128xf32>, vector<1x256xf32> -> vector<1x256xf32>
    %31 = tpu.iota {dimensions = array<i32: 1>} : vector<1x256xi32>
    %c256_i32_11 = arith.constant 256 : i32
    %32 = arith.muli %arg0, %c256_i32_11 : i32
    %33 = vector.broadcast %32 : i32 to vector<1x256xi32>
    %34 = arith.addi %33, %31 : vector<1x256xi32>
    %c640_i32_12 = arith.constant 640 : i32
    %35 = vector.broadcast %c640_i32_12 : i32 to vector<1x256xi32>
    %36 = arith.cmpi slt, %34, %35 : vector<1x256xi32>
    %cst_13 = arith.constant -1.000000e+30 : f32
    %37 = vector.broadcast %cst_13 : f32 to vector<1x256xf32>
    %38 = arith.select %36, %30, %37 : vector<1x256xi1>, vector<1x256xf32>
    %c0_14 = arith.constant 0 : index
    %c0_15 = arith.constant 0 : index
    %39 = vector.load %arg9[%c0_14, %c0_15] : memref<1x256xf32, #tpu.memory_space<vmem>>, vector<1x256xf32>
    tpu.vector_store %arg9[%c0_14, %c0_15], %38 {strides = array<i32>} : memref<1x256xf32, #tpu.memory_space<vmem>>, vector<1x256xf32>,
    %cst_16 = arith.constant dense<0xFF800000> : vector<1xf32>
    %40 = vector.multi_reduction <maximumf>, %38, %cst_16 [1] : vector<1x256xf32> to vector<1xf32>
    %41 = vector.shape_cast %40 : vector<1xf32> to vector<1x1xf32>
    %c0_17 = arith.constant 0 : index
    %c0_18 = arith.constant 0 : index
    %42 = vector.load %arg10[%c0_17, %c0_18] : memref<1x1xf32, #tpu.memory_space<vmem>>, vector<1x1xf32>
    %43 = arith.maximumf %42, %41 : vector<1x1xf32>
    %c0_19 = arith.constant 0 : index
    %c0_20 = arith.constant 0 : index
    %44 = vector.load %arg10[%c0_19, %c0_20] : memref<1x1xf32, #tpu.memory_space<vmem>>, vector<1x1xf32>
    %45 = arith.subf %44, %43 : vector<1x1xf32>
    %46 = math.exp %45 : vector<1x1xf32>
    %47 = vector.broadcast %43 : vector<1x1xf32> to vector<1x256xf32>
    %48 = arith.subf %38, %47 : vector<1x256xf32>
    %49 = math.exp %48 : vector<1x256xf32>
    %c0_21 = arith.constant 0 : index
    %c0_22 = arith.constant 0 : index
    %50 = vector.load %arg11[%c0_21, %c0_22] : memref<1x1xf32, #tpu.memory_space<vmem>>, vector<1x1xf32>
    %51 = arith.mulf %46, %50 : vector<1x1xf32>
    %cst_23 = arith.constant dense<0.000000e+00> : vector<1xf32>
    %52 = vector.multi_reduction <add>, %49, %cst_23 [1] : vector<1x256xf32> to vector<1xf32>
    %53 = vector.shape_cast %52 : vector<1xf32> to vector<1x1xf32>
    %54 = arith.addf %51, %53 : vector<1x1xf32>
    %c0_24 = arith.constant 0 : index
    %c0_25 = arith.constant 0 : index
    %55 = vector.load %arg11[%c0_24, %c0_25] : memref<1x1xf32, #tpu.memory_space<vmem>>, vector<1x1xf32>
    tpu.vector_store %arg11[%c0_24, %c0_25], %54 {strides = array<i32>} : memref<1x1xf32, #tpu.memory_space<vmem>>, vector<1x1xf32>,
    %c0_26 = arith.constant 0 : index
    %c0_27 = arith.constant 0 : index
    %56 = vector.load %arg12[%c0_26, %c0_27] : memref<1x512xf32, #tpu.memory_space<vmem>>, vector<1x512xf32>
    %57 = vector.broadcast %46 : vector<1x1xf32> to vector<1x512xf32>
    %58 = arith.mulf %57, %56 : vector<1x512xf32>
    %cst_28 = arith.constant dense<0.000000e+00> : vector<1x512xf32>
    %59 = tpu.matmul %49, %13, %cst_28 {dimension_numbers = #tpu.dot_dimension_numbers<[1], [0], [0], [1], [0, 0, 1, 1], [], []>} : vector<1x256xf32>, vector<256x512xf32>, vector<1x512xf32> -> vector<1x512xf32>
    %60 = arith.addf %58, %59 : vector<1x512xf32>
    %c0_29 = arith.constant 0 : index
    %c0_30 = arith.constant 0 : index
    %61 = vector.load %arg12[%c0_29, %c0_30] : memref<1x512xf32, #tpu.memory_space<vmem>>, vector<1x512xf32>
    tpu.vector_store %arg12[%c0_29, %c0_30], %60 {strides = array<i32>} : memref<1x512xf32, #tpu.memory_space<vmem>>, vector<1x512xf32>,
    %c0_31 = arith.constant 0 : index
    %c0_32 = arith.constant 0 : index
    %62 = vector.load %arg10[%c0_31, %c0_32] : memref<1x1xf32, #tpu.memory_space<vmem>>, vector<1x1xf32>
    tpu.vector_store %arg10[%c0_31, %c0_32], %43 {strides = array<i32>} : memref<1x1xf32, #tpu.memory_space<vmem>>, vector<1x1xf32>,
    %c2_i32 = arith.constant 2 : i32
    %63 = arith.cmpi eq, %arg0, %c2_i32 : i32
    %64 = arith.extui %63 : i1 to i32
    %c0_i32_33 = arith.constant 0 : i32
    %65 = arith.cmpi ne, %64, %c0_i32_33 : i32
    scf.if %65 {
      %c0_34 = arith.constant 0 : index
      %c0_35 = arith.constant 0 : index
      %66 = vector.load %arg12[%c0_34, %c0_35] : memref<1x512xf32, #tpu.memory_space<vmem>>, vector<1x512xf32>
      %c0_36 = arith.constant 0 : index
      %c0_37 = arith.constant 0 : index
      %67 = vector.load %arg11[%c0_36, %c0_37] : memref<1x1xf32, #tpu.memory_space<vmem>>, vector<1x1xf32>
      %68 = vector.broadcast %67 : vector<1x1xf32> to vector<1x512xf32>
      %69 = arith.divf %66, %68 : vector<1x512xf32>
      %c0_38 = arith.constant 0 : index
      %c0_39 = arith.constant 0 : index
      %70 = vector.load %arg5[%c0_38, %c0_39] : memref<1x512xf32, #tpu.memory_space<vmem>>, vector<1x512xf32>
      %71 = arith.mulf %69, %70 : vector<1x512xf32>
      %cst_40 = arith.constant dense<0.000000e+00> : vector<1xf32>
      %72 = vector.multi_reduction <add>, %71, %cst_40 [1] : vector<1x512xf32> to vector<1xf32>
      %73 = vector.shape_cast %72 : vector<1xf32> to vector<1x1xf32>
      %c0_41 = arith.constant 0 : index
      %c0_42 = arith.constant 0 : index
      %74 = vector.load %arg6[%c0_41, %c0_42] : memref<1x1xf32, #tpu.memory_space<vmem>>, vector<1x1xf32>
      %75 = arith.addf %73, %74 : vector<1x1xf32>
      %76 = arith.negf %75 : vector<1x1xf32>
      %77 = math.exp %76 : vector<1x1xf32>
      %cst_43 = arith.constant 1.000000e+00 : f32
      %78 = vector.broadcast %cst_43 : f32 to vector<1x1xf32>
      %79 = arith.addf %78, %77 : vector<1x1xf32>
      %80 = arith.divf %78, %79 : vector<1x1xf32>
      %c0_44 = arith.constant 0 : index
      %c0_45 = arith.constant 0 : index
      %81 = vector.load %arg7[%c0_44, %c0_45] : memref<1x1xf32, #tpu.memory_space<vmem>>, vector<1x1xf32>
      tpu.vector_store %arg7[%c0_44, %c0_45], %80 {strides = array<i32>} : memref<1x1xf32, #tpu.memory_space<vmem>>, vector<1x1xf32>,
      %cst_46 = arith.constant 5.000000e-01 : f32
      %82 = vector.broadcast %cst_46 : f32 to vector<1x1xf32>
      %83 = arith.cmpf oge, %80, %82 : vector<1x1xf32>
      %84 = arith.extui %83 : vector<1x1xi1> to vector<1x1xi32>
      %85 = arith.sitofp %84 : vector<1x1xi32> to vector<1x1xf32>
      %c0_47 = arith.constant 0 : index
      %c0_48 = arith.constant 0 : index
      %86 = vector.load %arg8[%c0_47, %c0_48] : memref<1x1xf32, #tpu.memory_space<vmem>>, vector<1x1xf32>
      tpu.vector_store %arg8[%c0_47, %c0_48], %85 {strides = array<i32>} : memref<1x1xf32, #tpu.memory_space<vmem>>, vector<1x1xf32>,
    } else {
    }
    return
  }
  func.func @transform_0(%arg0: i32) -> (i32, i32) {
    %c0_i32 = arith.constant 0 : i32
    %c0_i32_0 = arith.constant 0 : i32
    return %arg0, %c0_i32 : i32, i32
  }
  func.func @transform_1(%arg0: i32) -> (i32, i32) {
    %c0_i32 = arith.constant 0 : i32
    %c0_i32_0 = arith.constant 0 : i32
    %c0_i32_1 = arith.constant 0 : i32
    return %c0_i32, %c0_i32_0 : i32, i32
  }
  func.func @transform_2(%arg0: i32) -> (i32, i32) {
    %c0_i32 = arith.constant 0 : i32
    %c0_i32_0 = arith.constant 0 : i32
    %c0_i32_1 = arith.constant 0 : i32
    return %c0_i32, %c0_i32_0 : i32, i32
  }
  func.func @transform_3(%arg0: i32) -> (i32, i32) {
    %c0_i32 = arith.constant 0 : i32
    %c0_i32_0 = arith.constant 0 : i32
    %c0_i32_1 = arith.constant 0 : i32
    return %c0_i32, %c0_i32_0 : i32, i32
  }
  func.func @transform_4(%arg0: i32) -> (i32, i32) {
    %c0_i32 = arith.constant 0 : i32
    %c0_i32_0 = arith.constant 0 : i32
    %c0_i32_1 = arith.constant 0 : i32
    return %c0_i32, %c0_i32_0 : i32, i32
  }
  func.func @transform_5(%arg0: i32) -> (i32, i32) {
    %c0_i32 = arith.constant 0 : i32
    %c0_i32_0 = arith.constant 0 : i32
    %c0_i32_1 = arith.constant 0 : i32
    return %c0_i32, %c0_i32_0 : i32, i32
  }
  func.func @transform_6(%arg0: i32) -> (i32, i32) {
    %c0_i32 = arith.constant 0 : i32
    %c0_i32_0 = arith.constant 0 : i32
    %c0_i32_1 = arith.constant 0 : i32
    return %c0_i32, %c0_i32_0 : i32, i32
  }
  func.func @transform_7(%arg0: i32) -> (i32, i32) {
    %c0_i32 = arith.constant 0 : i32
    %c0_i32_0 = arith.constant 0 : i32
    %c0_i32_1 = arith.constant 0 : i32
    return %c0_i32, %c0_i32_0 : i32, i32
  }
  func.func @transform_8(%arg0: i32) -> (i32, i32) {
    %c0_i32 = arith.constant 0 : i32
    %c0_i32_0 = arith.constant 0 : i32
    return %c0_i32, %arg0 : i32, i32
  }
  func.func @transform_9(%arg0: i32) -> (i32, i32) {
    %c0_i32 = arith.constant 0 : i32
    %c0_i32_0 = arith.constant 0 : i32
    %c0_i32_1 = arith.constant 0 : i32
    return %c0_i32, %c0_i32_0 : i32, i32
  }
  func.func @transform_10(%arg0: i32) -> (i32, i32) {
    %c0_i32 = arith.constant 0 : i32
    %c0_i32_0 = arith.constant 0 : i32
    %c0_i32_1 = arith.constant 0 : i32
    return %c0_i32, %c0_i32_0 : i32, i32
  }
}

</mosaic_0001>

<llo_original>
// kernel: tpu_custom_call.1
$region0: #{tpu_custom_call.1}
  #allocation0 [shape = 'u32[]', space=smem, size = 0x4, offset = 0x4, fixed_abs, tag = 'smem constant byte address 0x4 - core index']
  #allocation1 [shape = 'u32[144,128]{1,0:T(1,128)}', space=vmem, size = 0x12000, scoped, tag = 'internal scratch']
  #allocation2 [shape = 'f32[1,512]{1,0:T(1,128)}', space=vmem, size = 0x800, scoped, tag = 'scratch operand']
  #allocation3 [shape = 'f32[1,1]{1,0:T(1,128)S(1)}', space=vmem, size = 0x200, scoped, tag = 'scoped memory for tpu_custom_call.1']
  %s0 = inlined_call_operand.hbm [shape: f32[640,512], index: 0, kind: input, shape index: {}]
  %s1 = inlined_call_operand.hbm [shape: bf16[512,256], index: 1, kind: input, shape index: {}]
  %s2 = inlined_call_operand.hbm [shape: f32[1,256], index: 2, kind: input, shape index: {}]
  %s3 = inlined_call_operand.hbm [shape: f32[1,128], index: 3, kind: input, shape index: {}]
  %s4 = inlined_call_operand.hbm [shape: f32[1,512], index: 4, kind: input, shape index: {}]
  %s5 = inlined_call_operand.<no memory space> [shape: f32[1,1], index: 5, kind: input, shape index: {}]
  %s6 = inlined_call_operand.hbm [shape: f32[1,1], index: 6, kind: output, shape index: {0}]
  %s7 = inlined_call_operand.hbm [shape: f32[1,1], index: 7, kind: output, shape index: {1}]
  %s8 = inlined_call_operand.hbm [shape: f32[1,768], index: 8, kind: output, shape index: {2}]
  %s9 = inlined_call_operand.hbm [shape: f32[1,1], index: 9, kind: output, shape index: {3}]
  %s10 = inlined_call_operand.hbm [shape: f32[1,1], index: 10, kind: output, shape index: {4}]
  %11 = xla_tuple %s6, %s7, %s8, %s9, %s10
  %s12 = sld [smem:[#allocation0]]
  $region117: #{tpu_custom_call.1} parent=0
    _
  %s14 = ssub.s32 1, %s12
  %s15 = scalar_select 0, %s14, %s12
  %v16 = vstv %s5
  %17 = vst [vmem:[#allocation3] sm:$0x1] %v16
  $region1: #{tpu_custom_call.1} parent=0
    #allocation4 [shape = 'u8[1048576]{0}', space=vmem, size = 0x100000, scoped, tag = 'input window, operand 0']
    #allocation5 [shape = 's32[2]{0}', space=sflag, size = 0x8, scoped, tag = 'scoped memory for tpu_custom_call.1']
    #allocation6 [shape = 's32[2]{0}', space=sflag, size = 0x8, scoped, tag = 'scoped memory for tpu_custom_call.1']
    #allocation7 [shape = 'u8[262144]{0}', space=vmem, size = 0x40000, scoped, tag = 'input window, operand 1, single buffered']
    #allocation8 [shape = 's32[1]{0}', space=sflag, size = 0x4, scoped, tag = 'scoped memory for tpu_custom_call.1']
    #allocation9 [shape = 'u8[1024]{0}', space=vmem, size = 0x400, scoped, tag = 'input window, operand 2, single buffered']
    #allocation10 [shape = 'u8[512]{0}', space=vmem, size = 0x400, scoped, tag = 'input window, operand 3, single buffered']
    #allocation11 [shape = 's32[1]{0}', space=sflag, size = 0x4, scoped, tag = 'scoped memory for tpu_custom_call.1']
    #allocation12 [shape = 'u8[2048]{0}', space=vmem, size = 0x800, scoped, tag = 'input window, operand 4, single buffered']
    #allocation13 [shape = 'u8[512]{0}', space=vmem, size = 0x400, scoped, tag = 'output window, operand 0, single buffered']
    #allocation14 [shape = 'u8[512]{0}', space=vmem, size = 0x400, scoped, tag = 'output window, operand 1, single buffered']
    #allocation15 [shape = 's32[1]{0}', space=sflag, size = 0x4, scoped, tag = 'scoped memory for tpu_custom_call.1']
    #allocation16 [shape = 'u8[2048]{0}', space=vmem, size = 0x800, scoped, tag = 'output window, operand 2']
    #allocation17 [shape = 'u8[512]{0}', space=vmem, size = 0x400, scoped, tag = 'output window, operand 3, single buffered']
    #allocation18 [shape = 'u8[512]{0}', space=vmem, size = 0x400, scoped, tag = 'output window, operand 4, single buffered']
    #allocation19 [shape = 's32[1]{0}', space=sflag, size = 0x4, scoped, tag = 'scoped memory for tpu_custom_call.1']
    %18 = vsyncpa [#allocation5], 0
    %s19 = scalar_lea.sflag [#allocation5], 1
    %20 = vsyncpa %s19, 0
    %21 = vsyncpa [#allocation8], 0
    %22 = vsyncpa [#allocation11], 0
    %23 = vsyncpa [#allocation6], 0
    %24 = vsyncpa [#allocation15], 0
    %25 = vsyncpa [#allocation19], 0
    loop: start=0, step=1, limit=5
    $region2: #{tpu_custom_call.1} parent=1 // loop_pre_header
      _
    $region3: #{tpu_custom_call.1} parent=1 // loop_header
      %s27 = sphi 0, %s31
      %p28 = scmp.ge.s32.totalorder %s27, 5
      %s37 = sphi 0, %s39
      %s40 = sphi 0, %s37
      %s41 = sphi 0, %s40
      %s57 = sphi 0, %s41
      %s61 = sphi 0, %s61
      %s63 = sphi 0, %s61
      %s64 = sphi 0, %s63
      %s78 = sphi 0, %s64
      %s82 = sphi 0, %s82
      %s84 = sphi 0, %s82
      %s85 = sphi 0, %s84
      %s99 = sphi 0, %s85
      %s103 = sphi 0, %s103
      %s105 = sphi 0, %s103
      %s106 = sphi 0, %s105
      %s120 = sphi 0, %s106
      %s124 = sphi 0, %s124
      %s126 = sphi 0, %s124
      %s127 = sphi 0, %s126
      %s141 = sphi 0, %s127
      %s145 = sphi 0, %s145
      %s147 = sphi 0, %s145
      %s148 = sphi 0, %s147
      %s162 = sphi 0, %s148
      %s166 = sphi 0, %s166
      %s168 = sphi 0, %s166
      %s169 = sphi 0, %s168
      %s183 = sphi 0, %s169
      %s187 = sphi 0, %s187
      %s189 = sphi 0, %s187
      %s190 = sphi 0, %s189
      %s204 = sphi 0, %s190
      %s210 = sphi 0, %s212
      %s213 = sphi 0, %s210
      %s214 = sphi 0, %s213
      %s230 = sphi 0, %s214
      %s234 = sphi 0, %s234
      %s236 = sphi 0, %s234
      %s237 = sphi 0, %s236
      %s251 = sphi 0, %s237
      %s255 = sphi 0, %s255
      %s257 = sphi 0, %s255
      %s258 = sphi 0, %s257
      %s272 = sphi 0, %s258
    $region4: #{tpu_custom_call.1} parent=1 // loop_header_branch
      %30 = sbr.rel (%p28) target = $region8
    $region5: #{tpu_custom_call.1} parent=1 // loop_body
      %s32 = ssub.s32 %s27, 1
      %s33 = ssub.s32 %s27, 2
      %s34 = sadd.s32 %s27, 1
      %s35 = ssub.s32 %s27, %s34
      %p36 = scmp.eq.s32.totalorder %s35, 0
      %s38 = sadd.s32 %s37, 1
      %s39 = scalar_select %p36, %s37, %s38
      %p42 = pneg %p36
      %p43 = scmp.eq.s32.totalorder %s27, 2
      %p44 = por %p42, %p43
      %p45 = scmp.ne.s32.totalorder %s37, %s40
      %p46 = scmp.eq.s32.totalorder %s27, 0
      %p47 = por %p45, %p46
      %p48 = scmp.ne.s32.totalorder %s37, %s40
      %p49 = scmp.eq.s32.totalorder %s32, 2
      %p50 = por %p48, %p49
      %p51 = scmp.ne.s32.totalorder %s40, %s41
      %p52 = scmp.eq.s32.totalorder %s32, 0
      %p53 = por %p51, %p52
      %p54 = scmp.ne.s32.totalorder %s40, %s41
      %p55 = scmp.eq.s32.totalorder %s33, 2
      %p56 = por %p54, %p55
      %p58 = scmp.ne.s32.totalorder %s41, %s57
      %p59 = scmp.eq.s32.totalorder %s33, 0
      %p60 = por %p58, %p59
      %s62 = sadd.s32 %s61, 1
      %p65 = scmp.eq.s32.totalorder %s27, 2
      %p66 = scmp.ne.s32.totalorder %s61, %s63
      %p67 = scmp.eq.s32.totalorder %s27, 0
      %p68 = por %p66, %p67
      %p69 = scmp.ne.s32.totalorder %s61, %s63
      %p70 = scmp.eq.s32.totalorder %s32, 2
      %p71 = por %p69, %p70
      %p72 = scmp.ne.s32.totalorder %s63, %s64
      %p73 = scmp.eq.s32.totalorder %s32, 0
      %p74 = por %p72, %p73
      %p75 = scmp.ne.s32.totalorder %s63, %s64
      %p76 = scmp.eq.s32.totalorder %s33, 2
      %p77 = por %p75, %p76
      %p79 = scmp.ne.s32.totalorder %s64, %s78
      %p80 = scmp.eq.s32.totalorder %s33, 0
      %p81 = por %p79, %p80
      %s83 = sadd.s32 %s82, 1
      %p86 = scmp.eq.s32.totalorder %s27, 2
      %p87 = scmp.ne.s32.totalorder %s82, %s84
      %p88 = scmp.eq.s32.totalorder %s27, 0
      %p89 = por %p87, %p88
      %p90 = scmp.ne.s32.totalorder %s82, %s84
      %p91 = scmp.eq.s32.totalorder %s32, 2
      %p92 = por %p90, %p91
      %p93 = scmp.ne.s32.totalorder %s84, %s85
      %p94 = scmp.eq.s32.totalorder %s32, 0
      %p95 = por %p93, %p94
      %p96 = scmp.ne.s32.totalorder %s84, %s85
      %p97 = scmp.eq.s32.totalorder %s33, 2
      %p98 = por %p96, %p97
      %p100 = scmp.ne.s32.totalorder %s85, %s99
      %p101 = scmp.eq.s32.totalorder %s33, 0
      %p102 = por %p100, %p101
      %s104 = sadd.s32 %s103, 1
      %p107 = scmp.eq.s32.totalorder %s27, 2
      %p108 = scmp.ne.s32.totalorder %s103, %s105
      %p109 = scmp.eq.s32.totalorder %s27, 0
      %p110 = por %p108, %p109
      %p111 = scmp.ne.s32.totalorder %s103, %s105
      %p112 = scmp.eq.s32.totalorder %s32, 2
      %p113 = por %p111, %p112
      %p114 = scmp.ne.s32.totalorder %s105, %s106
      %p115 = scmp.eq.s32.totalorder %s32, 0
      %p116 = por %p114, %p115
      %p117 = scmp.ne.s32.totalorder %s105, %s106
      %p118 = scmp.eq.s32.totalorder %s33, 2
      %p119 = por %p117, %p118
      %p121 = scmp.ne.s32.totalorder %s106, %s120
      %p122 = scmp.eq.s32.totalorder %s33, 0
      %p123 = por %p121, %p122
      %s125 = sadd.s32 %s124, 1
      %p128 = scmp.eq.s32.totalorder %s27, 2
      %p129 = scmp.ne.s32.totalorder %s124, %s126
      %p130 = scmp.eq.s32.totalorder %s27, 0
      %p131 = por %p129, %p130
      %p132 = scmp.ne.s32.totalorder %s124, %s126
      %p133 = scmp.eq.s32.totalorder %s32, 2
      %p134 = por %p132, %p133
      %p135 = scmp.ne.s32.totalorder %s126, %s127
      %p136 = scmp.eq.s32.totalorder %s32, 0
      %p137 = por %p135, %p136
      %p138 = scmp.ne.s32.totalorder %s126, %s127
      %p139 = scmp.eq.s32.totalorder %s33, 2
      %p140 = por %p138, %p139
      %p142 = scmp.ne.s32.totalorder %s127, %s141
      %p143 = scmp.eq.s32.totalorder %s33, 0
      %p144 = por %p142, %p143
      %s146 = sadd.s32 %s145, 1
      %p149 = scmp.eq.s32.totalorder %s27, 2
      %p150 = scmp.ne.s32.totalorder %s145, %s147
      %p151 = scmp.eq.s32.totalorder %s27, 0
      %p152 = por %p150, %p151
      %p153 = scmp.ne.s32.totalorder %s145, %s147
      %p154 = scmp.eq.s32.totalorder %s32, 2
      %p155 = por %p153, %p154
      %p156 = scmp.ne.s32.totalorder %s147, %s148
      %p157 = scmp.eq.s32.totalorder %s32, 0
      %p158 = por %p156, %p157
      %p159 = scmp.ne.s32.totalorder %s147, %s148
      %p160 = scmp.eq.s32.totalorder %s33, 2
      %p161 = por %p159, %p160
      %p163 = scmp.ne.s32.totalorder %s148, %s162
      %p164 = scmp.eq.s32.totalorder %s33, 0
      %p165 = por %p163, %p164
      %s167 = sadd.s32 %s166, 1
      %p170 = scmp.eq.s32.totalorder %s27, 2
      %p171 = scmp.ne.s32.totalorder %s166, %s168
      %p172 = scmp.eq.s32.totalorder %s27, 0
      %p173 = por %p171, %p172
      %p174 = scmp.ne.s32.totalorder %s166, %s168
      %p175 = scmp.eq.s32.totalorder %s32, 2
      %p176 = por %p174, %p175
      %p177 = scmp.ne.s32.totalorder %s168, %s169
      %p178 = scmp.eq.s32.totalorder %s32, 0
      %p179 = por %p177, %p178
      %p180 = scmp.ne.s32.totalorder %s168, %s169
      %p181 = scmp.eq.s32.totalorder %s33, 2
      %p182 = por %p180, %p181
      %p184 = scmp.ne.s32.totalorder %s169, %s183
      %p185 = scmp.eq.s32.totalorder %s33, 0
      %p186 = por %p184, %p185
      %s188 = sadd.s32 %s187, 1
      %p191 = scmp.eq.s32.totalorder %s27, 2
      %p192 = scmp.ne.s32.totalorder %s187, %s189
      %p193 = scmp.eq.s32.totalorder %s27, 0
      %p194 = por %p192, %p193
      %p195 = scmp.ne.s32.totalorder %s187, %s189
      %p196 = scmp.eq.s32.totalorder %s32, 2
      %p197 = por %p195, %p196
      %p198 = scmp.ne.s32.totalorder %s189, %s190
      %p199 = scmp.eq.s32.totalorder %s32, 0
      %p200 = por %p198, %p199
      %p201 = scmp.ne.s32.totalorder %s189, %s190
      %p202 = scmp.eq.s32.totalorder %s33, 2
      %p203 = por %p201, %p202
      %p205 = scmp.ne.s32.totalorder %s190, %s204
      %p206 = scmp.eq.s32.totalorder %s33, 0
      %p207 = por %p205, %p206
      %s208 = ssub.s32 %s27, %s34
      %p209 = scmp.eq.s32.totalorder %s208, 0
      %s211 = sadd.s32 %s210, 1
      %s212 = scalar_select %p209, %s210, %s211
      %p215 = pneg %p209
      %p216 = scmp.eq.s32.totalorder %s27, 2
      %p217 = por %p215, %p216
      %p218 = scmp.ne.s32.totalorder %s210, %s213
      %p219 = scmp.eq.s32.totalorder %s27, 0
      %p220 = por %p218, %p219
      %p221 = scmp.ne.s32.totalorder %s210, %s213
      %p222 = scmp.eq.s32.totalorder %s32, 2
      %p223 = por %p221, %p222
      %p224 = scmp.ne.s32.totalorder %s213, %s214
      %p225 = scmp.eq.s32.totalorder %s32, 0
      %p226 = por %p224, %p225
      %p227 = scmp.ne.s32.totalorder %s213, %s214
      %p228 = scmp.eq.s32.totalorder %s33, 2
      %p229 = por %p227, %p228
      %p231 = scmp.ne.s32.totalorder %s214, %s230
      %p232 = scmp.eq.s32.totalorder %s33, 0
      %p233 = por %p231, %p232
      %s235 = sadd.s32 %s234, 1
      %p238 = scmp.eq.s32.totalorder %s27, 2
      %p239 = scmp.ne.s32.totalorder %s234, %s236
      %p240 = scmp.eq.s32.totalorder %s27, 0
      %p241 = por %p239, %p240
      %p242 = scmp.ne.s32.totalorder %s234, %s236
      %p243 = scmp.eq.s32.totalorder %s32, 2
      %p244 = por %p242, %p243
      %p245 = scmp.ne.s32.totalorder %s236, %s237
      %p246 = scmp.eq.s32.totalorder %s32, 0
      %p247 = por %p245, %p246
      %p248 = scmp.ne.s32.totalorder %s236, %s237
      %p249 = scmp.eq.s32.totalorder %s33, 2
      %p250 = por %p248, %p249
      %p252 = scmp.ne.s32.totalorder %s237, %s251
      %p253 = scmp.eq.s32.totalorder %s33, 0
      %p254 = por %p252, %p253
      %s256 = sadd.s32 %s255, 1
      %p259 = scmp.eq.s32.totalorder %s27, 2
      %p260 = scmp.ne.s32.totalorder %s255, %s257
      %p261 = scmp.eq.s32.totalorder %s27, 0
      %p262 = por %p260, %p261
      %p263 = scmp.ne.s32.totalorder %s255, %s257
      %p264 = scmp.eq.s32.totalorder %s32, 2
      %p265 = por %p263, %p264
      %p266 = scmp.ne.s32.totalorder %s257, %s258
      %p267 = scmp.eq.s32.totalorder %s32, 0
      %p268 = por %p266, %p267
      %p269 = scmp.ne.s32.totalorder %s257, %s258
      %p270 = scmp.eq.s32.totalorder %s33, 2
      %p271 = por %p269, %p270
      %p273 = scmp.ne.s32.totalorder %s258, %s272
      %p274 = scmp.eq.s32.totalorder %s33, 0
      %p275 = por %p273, %p274
      %p276 = scmp.le.s32.totalorder 1, %s27
      %p277 = scmp.lt.s32.totalorder %s27, 4
      %p278 = pnand %p276, %p277
      %p279 = pneg %p278
      // Predicated region
      $region9: #{tpu_custom_call.1} parent=5 // pred_check
        _
      $region10: #{tpu_custom_call.1} parent=5 // pred_check_branch
        %281 = sbr.rel (%p278) target = $region12
      $region11: #{tpu_custom_call.1} parent=5 // pred_region
        %s282 = ssub.s32 %s27, 1
        // Predicated region
        $region13: #{tpu_custom_call.1} parent=11 // pred_check
          %p283 = pneg %p74
        $region14: #{tpu_custom_call.1} parent=11 // pred_check_branch
          %285 = sbr.rel (%p283) target = $region16
        $region15: #{tpu_custom_call.1} parent=11 // pred_region
          %s287 = ssub.s32 8192, 8192
          %288 = vsyncadd [#allocation8], %s287
          %s289 = sshll.u32 [#allocation7], 4
          %s290 = int_to_ptr.vmem [resolvable:$true] %s289
          %295 = dma.hbm_to_vmem [thread:$0]  %s1, 8192, %s290, [#allocation8], 128, 128, 8
        $region16: #{tpu_custom_call.1} parent=11 // pred_fallthru
          _
        // Predicated region
        $region17: #{tpu_custom_call.1} parent=11 // pred_check
          %p296 = pneg %p95
        $region18: #{tpu_custom_call.1} parent=11 // pred_check_branch
          %298 = sbr.rel (%p296) target = $region20
        $region19: #{tpu_custom_call.1} parent=11 // pred_region
          %s300 = ssub.s32 32, 32
          %301 = vsyncadd [#allocation8], %s300
          %s303 = sshll.u32 [#allocation9], 4
          %s304 = int_to_ptr.vmem [resolvable:$true] %s303
          %306 = dma.hbm_to_vmem [thread:$0]  %s2, 32, %s304, [#allocation8]
        $region20: #{tpu_custom_call.1} parent=11 // pred_fallthru
          _
        // Predicated region
        $region21: #{tpu_custom_call.1} parent=11 // pred_check
          %p307 = pneg %p116
        $region22: #{tpu_custom_call.1} parent=11 // pred_check_branch
          %309 = sbr.rel (%p307) target = $region24
        $region23: #{tpu_custom_call.1} parent=11 // pred_region
          %s311 = ssub.s32 16, 16
          %312 = vsyncadd [#allocation11], %s311
          %s314 = sshll.u32 [#allocation10], 4
          %s315 = int_to_ptr.vmem [resolvable:$true] %s314
          %317 = dma.hbm_to_vmem [thread:$0]  %s3, 16, %s315, [#allocation11]
        $region24: #{tpu_custom_call.1} parent=11 // pred_fallthru
          _
        // Predicated region
        $region25: #{tpu_custom_call.1} parent=11 // pred_check
          %p318 = pneg %p137
        $region26: #{tpu_custom_call.1} parent=11 // pred_check_branch
          %320 = sbr.rel (%p318) target = $region28
        $region27: #{tpu_custom_call.1} parent=11 // pred_region
          %s322 = ssub.s32 64, 64
          %323 = vsyncadd [#allocation11], %s322
          %s325 = sshll.u32 [#allocation12], 4
          %s326 = int_to_ptr.vmem [resolvable:$true] %s325
          %328 = dma.hbm_to_vmem [thread:$0]  %s4, 64, %s326, [#allocation11]
        $region28: #{tpu_custom_call.1} parent=11 // pred_fallthru
          _
        // Predicated region
        $region29: #{tpu_custom_call.1} parent=11 // pred_check
          %p329 = pneg %p158
        $region30: #{tpu_custom_call.1} parent=11 // pred_check_branch
          %331 = sbr.rel (%p329) target = $region32
        $region31: #{tpu_custom_call.1} parent=11 // pred_region
          _
        $region32: #{tpu_custom_call.1} parent=11 // pred_fallthru
          _
      $region12: #{tpu_custom_call.1} parent=5 // pred_fallthru
        _
      %p332 = scmp.lt.s32.totalorder %s27, 3
      // Predicated region
      $region33: #{tpu_custom_call.1} parent=5 // pred_check
        %p333 = pneg %p332
      $region34: #{tpu_custom_call.1} parent=5 // pred_check_branch
        %335 = sbr.rel (%p333) target = $region36
      $region35: #{tpu_custom_call.1} parent=5 // pred_region
        // Predicated region
        $region37: #{tpu_custom_call.1} parent=35 // pred_check
          %p336 = pneg %p47
        $region38: #{tpu_custom_call.1} parent=35 // pred_check_branch
          %338 = sbr.rel (%p336) target = $region40
        $region39: #{tpu_custom_call.1} parent=35 // pred_region
          %s339 = sand.u32 %s37, 1
          %s340 = scalar_lea.sflag [#allocation5], %s339
          %s341 = sand.u32 %s37, 1
          %s342 = smul.addr %s341, 1024
          %s343 = scalar_lea.vmem [#allocation4], %s342
          %s344 = smul.u32 32, %s27
          %s345 = ssub.s32 80, %s344
          %p346 = scmp.lt.s32.totalorder %s345, 32
          %s347 = scalar_select %p346, %s345, 32
          %s348 = smul.u32 128, %s347
          %s349 = smul.u32 %s348, 4
          %s351 = ssub.s32 16384, %s349
          %352 = vsyncadd %s340, %s351
          %p353 = scmp.ne.s32.totalorder 0, %s349
          %s354 = smul.addr %s344, 4
          %s355 = smul.addr %s354, 128
          %s356 = scalar_lea.hbm %s0, %s355
          %s357 = smul.u32 32, %s347
          %s358 = sshll.u32 %s343, 4
          %s359 = int_to_ptr.vmem [resolvable:$true] %s358
          %s360 = sshll.u32 %s357, 4
          %364 = dma.hbm_to_vmem [thread:$0]  (%p353), %s356, %s360, %s359, %s340, 512, 512, 32
        $region40: #{tpu_custom_call.1} parent=35 // pred_fallthru
          _
      $region36: #{tpu_custom_call.1} parent=5 // pred_fallthru
        _
      %p365 = scmp.le.s32.totalorder 1, %s27
      %p366 = scmp.lt.s32.totalorder %s27, 4
      %p367 = pnand %p365, %p366
      %p368 = pneg %p367
      // Predicated region
      $region41: #{tpu_custom_call.1} parent=5 // pred_check
        _
      $region42: #{tpu_custom_call.1} parent=5 // pred_check_branch
        %370 = sbr.rel (%p367) target = $region44
      $region43: #{tpu_custom_call.1} parent=5 // pred_region
        %s371 = ssub.s32 %s27, 1
        %s372 = sand.u32 %s40, 1
        %s373 = scalar_lea.sflag [#allocation5], %s372
        %s374 = sand.u32 %s40, 1
        %s375 = smul.addr %s374, 1024
        %s376 = scalar_lea.vmem [#allocation4], %s375
        // Predicated region
        $region45: #{tpu_custom_call.1} parent=43 // pred_check
          %p377 = pneg %p53
        $region46: #{tpu_custom_call.1} parent=43 // pred_check_branch
          %379 = sbr.rel (%p377) target = $region48
        $region47: #{tpu_custom_call.1} parent=43 // pred_region
          %380 = dma.done %s373, 16384
        $region48: #{tpu_custom_call.1} parent=43 // pred_fallthru
          _
        // Predicated region
        $region49: #{tpu_custom_call.1} parent=43 // pred_check
          %p381 = pneg %p74
        $region50: #{tpu_custom_call.1} parent=43 // pred_check_branch
          %383 = sbr.rel (%p381) target = $region52
        $region51: #{tpu_custom_call.1} parent=43 // pred_region
          %384 = dma.done [#allocation8], 8192
        $region52: #{tpu_custom_call.1} parent=43 // pred_fallthru
          _
        // Predicated region
        $region53: #{tpu_custom_call.1} parent=43 // pred_check
          %p385 = pneg %p95
        $region54: #{tpu_custom_call.1} parent=43 // pred_check_branch
          %387 = sbr.rel (%p385) target = $region56
        $region55: #{tpu_custom_call.1} parent=43 // pred_region
          %388 = dma.done [#allocation8], 32
        $region56: #{tpu_custom_call.1} parent=43 // pred_fallthru
          _
        // Predicated region
        $region57: #{tpu_custom_call.1} parent=43 // pred_check
          %p389 = pneg %p116
        $region58: #{tpu_custom_call.1} parent=43 // pred_check_branch
          %391 = sbr.rel (%p389) target = $region60
        $region59: #{tpu_custom_call.1} parent=43 // pred_region
          %392 = dma.done [#allocation11], 16
        $region60: #{tpu_custom_call.1} parent=43 // pred_fallthru
          _
        // Predicated region
        $region61: #{tpu_custom_call.1} parent=43 // pred_check
          %p393 = pneg %p137
        $region62: #{tpu_custom_call.1} parent=43 // pred_check_branch
          %395 = sbr.rel (%p393) target = $region64
        $region63: #{tpu_custom_call.1} parent=43 // pred_region
          %396 = dma.done [#allocation11], 64
        $region64: #{tpu_custom_call.1} parent=43 // pred_fallthru
          _
        %s397 = sand.u32 %s40, 1
        %s398 = scalar_lea.sflag [#allocation5], %s397
        %s399 = sand.u32 %s40, 1
        %s400 = smul.addr %s399, 1024
        %s401 = scalar_lea.vmem [#allocation4], %s400
        %p402 = pneg %p53
        %p403 = pneg %p50
        %p404 = pneg %p74
        %p405 = pneg %p71
        %p406 = pneg %p95
        %p407 = pneg %p92
        %p408 = pneg %p116
        %p409 = pneg %p113
        %p410 = pneg %p137
        %p411 = pneg %p134
        %p412 = pneg %p158
        %p413 = pneg %p155
        %p414 = pneg %p179
        %p415 = pneg %p176
        %p416 = pneg %p200
        %p417 = pneg %p197
        %p418 = pneg %p226
        %p419 = pneg %p223
        %s420 = sand.u32 %s32, 1
        %s421 = scalar_lea.sflag [#allocation6], %s420
        %s422 = sand.u32 %s213, 1
        %s423 = smul.addr %s422, 2
        %s424 = scalar_lea.vmem [#allocation16], %s423
        %p425 = pneg %p247
        %p426 = pneg %p244
        %p427 = pneg %p268
        %p428 = pneg %p265
        %s429 = smul.u32 32, %s32
        %s430 = ssub.s32 80, %s429
        %p431 = scmp.lt.s32.totalorder %s430, 32
        %s432 = scalar_select %p431, %s430, 32
        %s433 = smul.u32 128, %s432
        %s434 = smul.u32 %s433, 4
        %s435 = smul.u32 2, %s32
        %p436 = scmp.eq.s32.totalorder %s32, 0
        // Predicated region
        $region65: #{tpu_custom_call.1} parent=43 // pred_check
          %p437 = pneg %p436
        $region66: #{tpu_custom_call.1} parent=43 // pred_check_branch
          %439 = sbr.rel (%p437) target = $region68
        $region67: #{tpu_custom_call.1} parent=43 // pred_region
          %vm440 = vcmask 0
          %441 = vst.msk [vmem:[#allocation17] sm:$0x1] %vm440, -inf
          %442 = vst.msk [vmem:[#allocation18] sm:$0x1] %vm440, 0.0
          %v443 = vlaneseq
          %vm444 = vcmp.ge.s32.totalorder %v443, 0
          %vm445 = vcmp.lt.s32.totalorder %v443, 512
          %vm446 = vmand %vm444, %vm445
          %447 = vst.msk [vmem:[#allocation2] sm:$0xf] %vm446, 0.0
        $region68: #{tpu_custom_call.1} parent=43 // pred_fallthru
          _
        %v448 = vlaneseq
        %v449 = vshrl.u32 %v448, 7
        %v450 = vadd.s32 %v449, 8
        %v451 = vadd.s32 %v449, 16
        %v452 = vadd.s32 %v449, 24
        %v453 = vadd.s32 %v449, 32
        %v454 = vadd.s32 %v449, 40
        %v455 = vadd.s32 %v449, 48
        %v456 = vadd.s32 %v449, 56
        %v457 = vadd.s32 %v449, 64
        %v458 = vadd.s32 %v449, 72
        %v459 = vadd.s32 %v449, 80
        %v460 = vadd.s32 %v449, 88
        %v461 = vadd.s32 %v449, 96
        %v462 = vadd.s32 %v449, 104
        %v463 = vadd.s32 %v449, 112
        %v464 = vadd.s32 %v449, 120
        %v465 = vadd.s32 %v449, 128
        %v466 = vadd.s32 %v449, 136
        %v467 = vadd.s32 %v449, 144
        %v468 = vadd.s32 %v449, 152
        %v469 = vadd.s32 %v449, 160
        %v470 = vadd.s32 %v449, 168
        %v471 = vadd.s32 %v449, 176
        %v472 = vadd.s32 %v449, 184
        %v473 = vadd.s32 %v449, 192
        %v474 = vadd.s32 %v449, 200
        %v475 = vadd.s32 %v449, 208
        %v476 = vadd.s32 %v449, 216
        %v477 = vadd.s32 %v449, 224
        %v478 = vadd.s32 %v449, 232
        %v479 = vadd.s32 %v449, 240
        %v480 = vadd.s32 %v449, 248
        %s481 = smul.u32 %s32, 256
        %v482 = vstv %s481
        %v483 = vadd.s32 %v482, %v449
        %v484 = vadd.s32 %v482, %v450
        %v485 = vadd.s32 %v482, %v451
        %v486 = vadd.s32 %v482, %v452
        %v487 = vadd.s32 %v482, %v453
        %v488 = vadd.s32 %v482, %v454
        %v489 = vadd.s32 %v482, %v455
        %v490 = vadd.s32 %v482, %v456
        %v491 = vadd.s32 %v482, %v457
        %v492 = vadd.s32 %v482, %v458
        %v493 = vadd.s32 %v482, %v459
        %v494 = vadd.s32 %v482, %v460
        %v495 = vadd.s32 %v482, %v461
        %v496 = vadd.s32 %v482, %v462
        %v497 = vadd.s32 %v482, %v463
        %v498 = vadd.s32 %v482, %v464
        %v499 = vadd.s32 %v482, %v465
        %v500 = vadd.s32 %v482, %v466
        %v501 = vadd.s32 %v482, %v467
        %v502 = vadd.s32 %v482, %v468
        %v503 = vadd.s32 %v482, %v469
        %v504 = vadd.s32 %v482, %v470
        %v505 = vadd.s32 %v482, %v471
        %v506 = vadd.s32 %v482, %v472
        %v507 = vadd.s32 %v482, %v473
        %v508 = vadd.s32 %v482, %v474
        %v509 = vadd.s32 %v482, %v475
        %v510 = vadd.s32 %v482, %v476
        %v511 = vadd.s32 %v482, %v477
        %v512 = vadd.s32 %v482, %v478
        %v513 = vadd.s32 %v482, %v479
        %v514 = vadd.s32 %v482, %v480
        %vm515 = vcmp.lt.s32.totalorder %v483, 640
        %vm516 = vcmp.lt.s32.totalorder %v484, 640
        %vm517 = vcmp.lt.s32.totalorder %v485, 640
        %vm518 = vcmp.lt.s32.totalorder %v486, 640
        %vm519 = vcmp.lt.s32.totalorder %v487, 640
        %vm520 = vcmp.lt.s32.totalorder %v488, 640
        %vm521 = vcmp.lt.s32.totalorder %v489, 640
        %vm522 = vcmp.lt.s32.totalorder %v490, 640
        %vm523 = vcmp.lt.s32.totalorder %v491, 640
        %vm524 = vcmp.lt.s32.totalorder %v492, 640
        %vm525 = vcmp.lt.s32.totalorder %v493, 640
        %vm526 = vcmp.lt.s32.totalorder %v494, 640
        %vm527 = vcmp.lt.s32.totalorder %v495, 640
        %vm528 = vcmp.lt.s32.totalorder %v496, 640
        %vm529 = vcmp.lt.s32.totalorder %v497, 640
        %vm530 = vcmp.lt.s32.totalorder %v498, 640
        %vm531 = vcmp.lt.s32.totalorder %v499, 640
        %vm532 = vcmp.lt.s32.totalorder %v500, 640
        %vm533 = vcmp.lt.s32.totalorder %v501, 640
        %vm534 = vcmp.lt.s32.totalorder %v502, 640
        %vm535 = vcmp.lt.s32.totalorder %v503, 640
        %vm536 = vcmp.lt.s32.totalorder %v504, 640
        %vm537 = vcmp.lt.s32.totalorder %v505, 640
        %vm538 = vcmp.lt.s32.totalorder %v506, 640
        %vm539 = vcmp.lt.s32.totalorder %v507, 640
        %vm540 = vcmp.lt.s32.totalorder %v508, 640
        %vm541 = vcmp.lt.s32.totalorder %v509, 640
        %vm542 = vcmp.lt.s32.totalorder %v510, 640
        %vm543 = vcmp.lt.s32.totalorder %v511, 640
        %vm544 = vcmp.lt.s32.totalorder %v512, 640
        %vm545 = vcmp.lt.s32.totalorder %v513, 640
        %vm546 = vcmp.lt.s32.totalorder %v514, 640
        %v547 = vld [vmem:[%s376] sm:$0xff]
        %v548 = vld [vmem:[%s376 + $0x8] sm:$0xff]
        %v549 = vld [vmem:[%s376 + $0x10] sm:$0xff]
        %v550 = vld [vmem:[%s376 + $0x18] sm:$0xff]
        %v551 = vld [vmem:[%s376 + $0x20] sm:$0xff]
        %v552 = vld [vmem:[%s376 + $0x28] sm:$0xff]
        %v553 = vld [vmem:[%s376 + $0x30] sm:$0xff]
        %v554 = vld [vmem:[%s376 + $0x38] sm:$0xff]
        %v555 = vld [vmem:[%s376 + $0x40] sm:$0xff]
        %v556 = vld [vmem:[%s376 + $0x48] sm:$0xff]
        %v557 = vld [vmem:[%s376 + $0x50] sm:$0xff]
        %v558 = vld [vmem:[%s376 + $0x58] sm:$0xff]
        %v559 = vld [vmem:[%s376 + $0x60] sm:$0xff]
        %v560 = vld [vmem:[%s376 + $0x68] sm:$0xff]
        %v561 = vld [vmem:[%s376 + $0x70] sm:$0xff]
        %v562 = vld [vmem:[%s376 + $0x78] sm:$0xff]
        %v563 = vld [vmem:[%s376 + $0x80] sm:$0xff]
        %v564 = vld [vmem:[%s376 + $0x88] sm:$0xff]
        %v565 = vld [vmem:[%s376 + $0x90] sm:$0xff]
        %v566 = vld [vmem:[%s376 + $0x98] sm:$0xff]
        %v567 = vld [vmem:[%s376 + $0xa0] sm:$0xff]
        %v568 = vld [vmem:[%s376 + $0xa8] sm:$0xff]
        %v569 = vld [vmem:[%s376 + $0xb0] sm:$0xff]
        %v570 = vld [vmem:[%s376 + $0xb8] sm:$0xff]
        %v571 = vld [vmem:[%s376 + $0xc0] sm:$0xff]
        %v572 = vld [vmem:[%s376 + $0xc8] sm:$0xff]
        %v573 = vld [vmem:[%s376 + $0xd0] sm:$0xff]
        %v574 = vld [vmem:[%s376 + $0xd8] sm:$0xff]
        %v575 = vld [vmem:[%s376 + $0xe0] sm:$0xff]
        %v576 = vld [vmem:[%s376 + $0xe8] sm:$0xff]
        %v577 = vld [vmem:[%s376 + $0xf0] sm:$0xff]
        %v578 = vld [vmem:[%s376 + $0xf8] sm:$0xff]
        %v579 = vld [vmem:[%s376 + $0x100] sm:$0xff]
        %v580 = vld [vmem:[%s376 + $0x108] sm:$0xff]
        %v581 = vld [vmem:[%s376 + $0x110] sm:$0xff]
        %v582 = vld [vmem:[%s376 + $0x118] sm:$0xff]
        %v583 = vld [vmem:[%s376 + $0x120] sm:$0xff]
        %v584 = vld [vmem:[%s376 + $0x128] sm:$0xff]
        %v585 = vld [vmem:[%s376 + $0x130] sm:$0xff]
        %v586 = vld [vmem:[%s376 + $0x138] sm:$0xff]
        %v587 = vld [vmem:[%s376 + $0x140] sm:$0xff]
        %v588 = vld [vmem:[%s376 + $0x148] sm:$0xff]
        %v589 = vld [vmem:[%s376 + $0x150] sm:$0xff]
        %v590 = vld [vmem:[%s376 + $0x158] sm:$0xff]
        %v591 = vld [vmem:[%s376 + $0x160] sm:$0xff]
        %v592 = vld [vmem:[%s376 + $0x168] sm:$0xff]
        %v593 = vld [vmem:[%s376 + $0x170] sm:$0xff]
        %v594 = vld [vmem:[%s376 + $0x178] sm:$0xff]
        %v595 = vld [vmem:[%s376 + $0x180] sm:$0xff]
        %v596 = vld [vmem:[%s376 + $0x188] sm:$0xff]
        %v597 = vld [vmem:[%s376 + $0x190] sm:$0xff]
        %v598 = vld [vmem:[%s376 + $0x198] sm:$0xff]
        %v599 = vld [vmem:[%s376 + $0x1a0] sm:$0xff]
        %v600 = vld [vmem:[%s376 + $0x1a8] sm:$0xff]
        %v601 = vld [vmem:[%s376 + $0x1b0] sm:$0xff]
        %v602 = vld [vmem:[%s376 + $0x1b8] sm:$0xff]
        %v603 = vld [vmem:[%s376 + $0x1c0] sm:$0xff]
        %v604 = vld [vmem:[%s376 + $0x1c8] sm:$0xff]
        %v605 = vld [vmem:[%s376 + $0x1d0] sm:$0xff]
        %v606 = vld [vmem:[%s376 + $0x1d8] sm:$0xff]
        %v607 = vld [vmem:[%s376 + $0x1e0] sm:$0xff]
        %v608 = vld [vmem:[%s376 + $0x1e8] sm:$0xff]
        %v609 = vld [vmem:[%s376 + $0x1f0] sm:$0xff]
        %v610 = vld [vmem:[%s376 + $0x1f8] sm:$0xff]
        %v611 = vld [vmem:[%s376 + $0x200] sm:$0xff]
        %v612 = vld [vmem:[%s376 + $0x208] sm:$0xff]
        %v613 = vld [vmem:[%s376 + $0x210] sm:$0xff]
        %v614 = vld [vmem:[%s376 + $0x218] sm:$0xff]
        %v615 = vld [vmem:[%s376 + $0x220] sm:$0xff]
        %v616 = vld [vmem:[%s376 + $0x228] sm:$0xff]
        %v617 = vld [vmem:[%s376 + $0x230] sm:$0xff]
        %v618 = vld [vmem:[%s376 + $0x238] sm:$0xff]
        %v619 = vld [vmem:[%s376 + $0x240] sm:$0xff]
        %v620 = vld [vmem:[%s376 + $0x248] sm:$0xff]
        %v621 = vld [vmem:[%s376 + $0x250] sm:$0xff]
        %v622 = vld [vmem:[%s376 + $0x258] sm:$0xff]
        %v623 = vld [vmem:[%s376 + $0x260] sm:$0xff]
        %v624 = vld [vmem:[%s376 + $0x268] sm:$0xff]
        %v625 = vld [vmem:[%s376 + $0x270] sm:$0xff]
        %v626 = vld [vmem:[%s376 + $0x278] sm:$0xff]
        %v627 = vld [vmem:[%s376 + $0x280] sm:$0xff]
        %v628 = vld [vmem:[%s376 + $0x288] sm:$0xff]
        %v629 = vld [vmem:[%s376 + $0x290] sm:$0xff]
        %v630 = vld [vmem:[%s376 + $0x298] sm:$0xff]
        %v631 = vld [vmem:[%s376 + $0x2a0] sm:$0xff]
        %v632 = vld [vmem:[%s376 + $0x2a8] sm:$0xff]
        %v633 = vld [vmem:[%s376 + $0x2b0] sm:$0xff]
        %v634 = vld [vmem:[%s376 + $0x2b8] sm:$0xff]
        %v635 = vld [vmem:[%s376 + $0x2c0] sm:$0xff]
        %v636 = vld [vmem:[%s376 + $0x2c8] sm:$0xff]
        %v637 = vld [vmem:[%s376 + $0x2d0] sm:$0xff]
        %v638 = vld [vmem:[%s376 + $0x2d8] sm:$0xff]
        %v639 = vld [vmem:[%s376 + $0x2e0] sm:$0xff]
        %v640 = vld [vmem:[%s376 + $0x2e8] sm:$0xff]
        %v641 = vld [vmem:[%s376 + $0x2f0] sm:$0xff]
        %v642 = vld [vmem:[%s376 + $0x2f8] sm:$0xff]
        %v643 = vld [vmem:[%s376 + $0x300] sm:$0xff]
        %v644 = vld [vmem:[%s376 + $0x308] sm:$0xff]
        %v645 = vld [vmem:[%s376 + $0x310] sm:$0xff]
        %v646 = vld [vmem:[%s376 + $0x318] sm:$0xff]
        %v647 = vld [vmem:[%s376 + $0x320] sm:$0xff]
        %v648 = vld [vmem:[%s376 + $0x328] sm:$0xff]
        %v649 = vld [vmem:[%s376 + $0x330] sm:$0xff]
        %v650 = vld [vmem:[%s376 + $0x338] sm:$0xff]
        %v651 = vld [vmem:[%s376 + $0x340] sm:$0xff]
        %v652 = vld [vmem:[%s376 + $0x348] sm:$0xff]
        %v653 = vld [vmem:[%s376 + $0x350] sm:$0xff]
        %v654 = vld [vmem:[%s376 + $0x358] sm:$0xff]
        %v655 = vld [vmem:[%s376 + $0x360] sm:$0xff]
        %v656 = vld [vmem:[%s376 + $0x368] sm:$0xff]
        %v657 = vld [vmem:[%s376 + $0x370] sm:$0xff]
        %v658 = vld [vmem:[%s376 + $0x378] sm:$0xff]
        %v659 = vld [vmem:[%s376 + $0x380] sm:$0xff]
        %v660 = vld [vmem:[%s376 + $0x388] sm:$0xff]
        %v661 = vld [vmem:[%s376 + $0x390] sm:$0xff]
        %v662 = vld [vmem:[%s376 + $0x398] sm:$0xff]
        %v663 = vld [vmem:[%s376 + $0x3a0] sm:$0xff]
        %v664 = vld [vmem:[%s376 + $0x3a8] sm:$0xff]
        %v665 = vld [vmem:[%s376 + $0x3b0] sm:$0xff]
        %v666 = vld [vmem:[%s376 + $0x3b8] sm:$0xff]
        %v667 = vld [vmem:[%s376 + $0x3c0] sm:$0xff]
        %v668 = vld [vmem:[%s376 + $0x3c8] sm:$0xff]
        %v669 = vld [vmem:[%s376 + $0x3d0] sm:$0xff]
        %v670 = vld [vmem:[%s376 + $0x3d8] sm:$0xff]
        %v671 = vld [vmem:[%s376 + $0x3e0] sm:$0xff]
        %v672 = vld [vmem:[%s376 + $0x3e8] sm:$0xff]
        %v673 = vld [vmem:[%s376 + $0x3f0] sm:$0xff]
        %v674 = vld [vmem:[%s376 + $0x3f8] sm:$0xff]
        %v675 = vsel %vm515, 1, 0
        %v676 = vsel %vm516, 1, 0
        %v677 = vsel %vm517, 1, 0
        %v678 = vsel %vm518, 1, 0
        %v679 = vsel %vm519, 1, 0
        %v680 = vsel %vm520, 1, 0
        %v681 = vsel %vm521, 1, 0
        %v682 = vsel %vm522, 1, 0
        %v683 = vsel %vm523, 1, 0
        %v684 = vsel %vm524, 1, 0
        %v685 = vsel %vm525, 1, 0
        %v686 = vsel %vm526, 1, 0
        %v687 = vsel %vm527, 1, 0
        %v688 = vsel %vm528, 1, 0
        %v689 = vsel %vm529, 1, 0
        %v690 = vsel %vm530, 1, 0
        %v691 = vsel %vm531, 1, 0
        %v692 = vsel %vm532, 1, 0
        %v693 = vsel %vm533, 1, 0
        %v694 = vsel %vm534, 1, 0
        %v695 = vsel %vm535, 1, 0
        %v696 = vsel %vm536, 1, 0
        %v697 = vsel %vm537, 1, 0
        %v698 = vsel %vm538, 1, 0
        %v699 = vsel %vm539, 1, 0
        %v700 = vsel %vm540, 1, 0
        %v701 = vsel %vm541, 1, 0
        %v702 = vsel %vm542, 1, 0
        %v703 = vsel %vm543, 1, 0
        %v704 = vsel %vm544, 1, 0
        %v705 = vsel %vm545, 1, 0
        %v706 = vsel %vm546, 1, 0
        %vm707 = vcmp.eq.s32.totalorder %v675, 1
        %vm708 = vcmp.eq.s32.totalorder %v676, 1
        %vm709 = vcmp.eq.s32.totalorder %v677, 1
        %vm710 = vcmp.eq.s32.totalorder %v678, 1
        %vm711 = vcmp.eq.s32.totalorder %v679, 1
        %vm712 = vcmp.eq.s32.totalorder %v680, 1
        %vm713 = vcmp.eq.s32.totalorder %v681, 1
        %vm714 = vcmp.eq.s32.totalorder %v682, 1
        %vm715 = vcmp.eq.s32.totalorder %v683, 1
        %vm716 = vcmp.eq.s32.totalorder %v684, 1
        %vm717 = vcmp.eq.s32.totalorder %v685, 1
        %vm718 = vcmp.eq.s32.totalorder %v686, 1
        %vm719 = vcmp.eq.s32.totalorder %v687, 1
        %vm720 = vcmp.eq.s32.totalorder %v688, 1
        %vm721 = vcmp.eq.s32.totalorder %v689, 1
        %vm722 = vcmp.eq.s32.totalorder %v690, 1
        %vm723 = vcmp.eq.s32.totalorder %v691, 1
        %vm724 = vcmp.eq.s32.totalorder %v692, 1
        %vm725 = vcmp.eq.s32.totalorder %v693, 1
        %vm726 = vcmp.eq.s32.totalorder %v694, 1
        %vm727 = vcmp.eq.s32.totalorder %v695, 1
        %vm728 = vcmp.eq.s32.totalorder %v696, 1
        %vm729 = vcmp.eq.s32.totalorder %v697, 1
        %vm730 = vcmp.eq.s32.totalorder %v698, 1
        %vm731 = vcmp.eq.s32.totalorder %v699, 1
        %vm732 = vcmp.eq.s32.totalorder %v700, 1
        %vm733 = vcmp.eq.s32.totalorder %v701, 1
        %vm734 = vcmp.eq.s32.totalorder %v702, 1
        %vm735 = vcmp.eq.s32.totalorder %v703, 1
        %vm736 = vcmp.eq.s32.totalorder %v704, 1
        %vm737 = vcmp.eq.s32.totalorder %v705, 1
        %vm738 = vcmp.eq.s32.totalorder %v706, 1
        %v739 = vsel %vm707, %v547, 0.0
        %v740 = vsel %vm707, %v548, 0.0
        %v741 = vsel %vm707, %v549, 0.0
        %v742 = vsel %vm707, %v550, 0.0
        %v743 = vsel %vm708, %v551, 0.0
        %v744 = vsel %vm708, %v552, 0.0
        %v745 = vsel %vm708, %v553, 0.0
        %v746 = vsel %vm708, %v554, 0.0
        %v747 = vsel %vm709, %v555, 0.0
        %v748 = vsel %vm709, %v556, 0.0
        %v749 = vsel %vm709, %v557, 0.0
        %v750 = vsel %vm709, %v558, 0.0
        %v751 = vsel %vm710, %v559, 0.0
        %v752 = vsel %vm710, %v560, 0.0
        %v753 = vsel %vm710, %v561, 0.0
        %v754 = vsel %vm710, %v562, 0.0
        %v755 = vsel %vm711, %v563, 0.0
        %v756 = vsel %vm711, %v564, 0.0
        %v757 = vsel %vm711, %v565, 0.0
        %v758 = vsel %vm711, %v566, 0.0
        %v759 = vsel %vm712, %v567, 0.0
        %v760 = vsel %vm712, %v568, 0.0
        %v761 = vsel %vm712, %v569, 0.0
        %v762 = vsel %vm712, %v570, 0.0
        %v763 = vsel %vm713, %v571, 0.0
        %v764 = vsel %vm713, %v572, 0.0
        %v765 = vsel %vm713, %v573, 0.0
        %v766 = vsel %vm713, %v574, 0.0
        %v767 = vsel %vm714, %v575, 0.0
        %v768 = vsel %vm714, %v576, 0.0
        %v769 = vsel %vm714, %v577, 0.0
        %v770 = vsel %vm714, %v578, 0.0
        %v771 = vsel %vm715, %v579, 0.0
        %v772 = vsel %vm715, %v580, 0.0
        %v773 = vsel %vm715, %v581, 0.0
        %v774 = vsel %vm715, %v582, 0.0
        %v775 = vsel %vm716, %v583, 0.0
        %v776 = vsel %vm716, %v584, 0.0
        %v777 = vsel %vm716, %v585, 0.0
        %v778 = vsel %vm716, %v586, 0.0
        %v779 = vsel %vm717, %v587, 0.0
        %v780 = vsel %vm717, %v588, 0.0
        %v781 = vsel %vm717, %v589, 0.0
        %v782 = vsel %vm717, %v590, 0.0
        %v783 = vsel %vm718, %v591, 0.0
        %v784 = vsel %vm718, %v592, 0.0
        %v785 = vsel %vm718, %v593, 0.0
        %v786 = vsel %vm718, %v594, 0.0
        %v787 = vsel %vm719, %v595, 0.0
        %v788 = vsel %vm719, %v596, 0.0
        %v789 = vsel %vm719, %v597, 0.0
        %v790 = vsel %vm719, %v598, 0.0
        %v791 = vsel %vm720, %v599, 0.0
        %v792 = vsel %vm720, %v600, 0.0
        %v793 = vsel %vm720, %v601, 0.0
        %v794 = vsel %vm720, %v602, 0.0
        %v795 = vsel %vm721, %v603, 0.0
        %v796 = vsel %vm721, %v604, 0.0
        %v797 = vsel %vm721, %v605, 0.0
        %v798 = vsel %vm721, %v606, 0.0
        %v799 = vsel %vm722, %v607, 0.0
        %v800 = vsel %vm722, %v608, 0.0
        %v801 = vsel %vm722, %v609, 0.0
        %v802 = vsel %vm722, %v610, 0.0
        %v803 = vsel %vm723, %v611, 0.0
        %v804 = vsel %vm723, %v612, 0.0
        %v805 = vsel %vm723, %v613, 0.0
        %v806 = vsel %vm723, %v614, 0.0
        %v807 = vsel %vm724, %v615, 0.0
        %v808 = vsel %vm724, %v616, 0.0
        %v809 = vsel %vm724, %v617, 0.0
        %v810 = vsel %vm724, %v618, 0.0
        %v811 = vsel %vm725, %v619, 0.0
        %v812 = vsel %vm725, %v620, 0.0
        %v813 = vsel %vm725, %v621, 0.0
        %v814 = vsel %vm725, %v622, 0.0
        %v815 = vsel %vm726, %v623, 0.0
        %v816 = vsel %vm726, %v624, 0.0
        %v817 = vsel %vm726, %v625, 0.0
        %v818 = vsel %vm726, %v626, 0.0
        %v819 = vsel %vm727, %v627, 0.0
        %v820 = vsel %vm727, %v628, 0.0
        %v821 = vsel %vm727, %v629, 0.0
        %v822 = vsel %vm727, %v630, 0.0
        %v823 = vsel %vm728, %v631, 0.0
        %v824 = vsel %vm728, %v632, 0.0
        %v825 = vsel %vm728, %v633, 0.0
        %v826 = vsel %vm728, %v634, 0.0
        %v827 = vsel %vm729, %v635, 0.0
        %v828 = vsel %vm729, %v636, 0.0
        %v829 = vsel %vm729, %v637, 0.0
        %v830 = vsel %vm729, %v638, 0.0
        %v831 = vsel %vm730, %v639, 0.0
        %v832 = vsel %vm730, %v640, 0.0
        %v833 = vsel %vm730, %v641, 0.0
        %v834 = vsel %vm730, %v642, 0.0
        %v835 = vsel %vm731, %v643, 0.0
        %v836 = vsel %vm731, %v644, 0.0
        %v837 = vsel %vm731, %v645, 0.0
        %v838 = vsel %vm731, %v646, 0.0
        %v839 = vsel %vm732, %v647, 0.0
        %v840 = vsel %vm732, %v648, 0.0
        %v841 = vsel %vm732, %v649, 0.0
        %v842 = vsel %vm732, %v650, 0.0
        %v843 = vsel %vm733, %v651, 0.0
        %v844 = vsel %vm733, %v652, 0.0
        %v845 = vsel %vm733, %v653, 0.0
        %v846 = vsel %vm733, %v654, 0.0
        %v847 = vsel %vm734, %v655, 0.0
        %v848 = vsel %vm734, %v656, 0.0
        %v849 = vsel %vm734, %v657, 0.0
        %v850 = vsel %vm734, %v658, 0.0
        %v851 = vsel %vm735, %v659, 0.0
        %v852 = vsel %vm735, %v660, 0.0
        %v853 = vsel %vm735, %v661, 0.0
        %v854 = vsel %vm735, %v662, 0.0
        %v855 = vsel %vm736, %v663, 0.0
        %v856 = vsel %vm736, %v664, 0.0
        %v857 = vsel %vm736, %v665, 0.0
        %v858 = vsel %vm736, %v666, 0.0
        %v859 = vsel %vm737, %v667, 0.0
        %v860 = vsel %vm737, %v668, 0.0
        %v861 = vsel %vm737, %v669, 0.0
        %v862 = vsel %vm737, %v670, 0.0
        %v863 = vsel %vm738, %v671, 0.0
        %v864 = vsel %vm738, %v672, 0.0
        %v865 = vsel %vm738, %v673, 0.0
        %v866 = vsel %vm738, %v674, 0.0
        %v867 = vpack.c.bf16 %v743, %v739
        %v868 = vpack.c.bf16 %v744, %v740
        %v869 = vpack.c.bf16 %v745, %v741
        %v870 = vpack.c.bf16 %v746, %v742
        %v871 = vpack.c.bf16 %v751, %v747
        %v872 = vpack.c.bf16 %v752, %v748
        %v873 = vpack.c.bf16 %v753, %v749
        %v874 = vpack.c.bf16 %v754, %v750
        %v875 = vpack.c.bf16 %v759, %v755
        %v876 = vpack.c.bf16 %v760, %v756
        %v877 = vpack.c.bf16 %v761, %v757
        %v878 = vpack.c.bf16 %v762, %v758
        %v879 = vpack.c.bf16 %v767, %v763
        %v880 = vpack.c.bf16 %v768, %v764
        %v881 = vpack.c.bf16 %v769, %v765
        %v882 = vpack.c.bf16 %v770, %v766
        %v883 = vpack.c.bf16 %v775, %v771
        %v884 = vpack.c.bf16 %v776, %v772
        %v885 = vpack.c.bf16 %v777, %v773
        %v886 = vpack.c.bf16 %v778, %v774
        %v887 = vpack.c.bf16 %v783, %v779
        %v888 = vpack.c.bf16 %v784, %v780
        %v889 = vpack.c.bf16 %v785, %v781
        %v890 = vpack.c.bf16 %v786, %v782
        %v891 = vpack.c.bf16 %v791, %v787
        %v892 = vpack.c.bf16 %v792, %v788
        %v893 = vpack.c.bf16 %v793, %v789
        %v894 = vpack.c.bf16 %v794, %v790
        %v895 = vpack.c.bf16 %v799, %v795
        %v896 = vpack.c.bf16 %v800, %v796
        %v897 = vpack.c.bf16 %v801, %v797
        %v898 = vpack.c.bf16 %v802, %v798
        %v899 = vpack.c.bf16 %v807, %v803
        %v900 = vpack.c.bf16 %v808, %v804
        %v901 = vpack.c.bf16 %v809, %v805
        %v902 = vpack.c.bf16 %v810, %v806
        %v903 = vpack.c.bf16 %v815, %v811
        %v904 = vpack.c.bf16 %v816, %v812
        %v905 = vpack.c.bf16 %v817, %v813
        %v906 = vpack.c.bf16 %v818, %v814
        %v907 = vpack.c.bf16 %v823, %v819
        %v908 = vpack.c.bf16 %v824, %v820
        %v909 = vpack.c.bf16 %v825, %v821
        %v910 = vpack.c.bf16 %v826, %v822
        %v911 = vpack.c.bf16 %v831, %v827
        %v912 = vpack.c.bf16 %v832, %v828
        %v913 = vpack.c.bf16 %v833, %v829
        %v914 = vpack.c.bf16 %v834, %v830
        %v915 = vpack.c.bf16 %v839, %v835
        %v916 = vpack.c.bf16 %v840, %v836
        %v917 = vpack.c.bf16 %v841, %v837
        %v918 = vpack.c.bf16 %v842, %v838
        %v919 = vpack.c.bf16 %v847, %v843
        %v920 = vpack.c.bf16 %v848, %v844
        %v921 = vpack.c.bf16 %v849, %v845
        %v922 = vpack.c.bf16 %v850, %v846
        %v923 = vpack.c.bf16 %v855, %v851
        %v924 = vpack.c.bf16 %v856, %v852
        %v925 = vpack.c.bf16 %v857, %v853
        %v926 = vpack.c.bf16 %v858, %v854
        %v927 = vpack.c.bf16 %v863, %v859
        %v928 = vpack.c.bf16 %v864, %v860
        %v929 = vpack.c.bf16 %v865, %v861
        %v930 = vpack.c.bf16 %v866, %v862
        %v931 = vld [vmem:[#allocation7] sm:$0xff]
        %v932 = vld [vmem:[#allocation7 + $0x8] sm:$0xff]
        %v933 = vld [vmem:[#allocation7 + $0x10] sm:$0xff]
        %v934 = vld [vmem:[#allocation7 + $0x18] sm:$0xff]
        %v935 = vld [vmem:[#allocation7 + $0x20] sm:$0xff]
        %v936 = vld [vmem:[#allocation7 + $0x28] sm:$0xff]
        %v937 = vld [vmem:[#allocation7 + $0x30] sm:$0xff]
        %v938 = vld [vmem:[#allocation7 + $0x38] sm:$0xff]
        %v939 = vld [vmem:[#allocation7 + $0x40] sm:$0xff]
        %v940 = vld [vmem:[#allocation7 + $0x48] sm:$0xff]
        %v941 = vld [vmem:[#allocation7 + $0x50] sm:$0xff]
        %v942 = vld [vmem:[#allocation7 + $0x58] sm:$0xff]
        %v943 = vld [vmem:[#allocation7 + $0x60] sm:$0xff]
        %v944 = vld [vmem:[#allocation7 + $0x68] sm:$0xff]
        %v945 = vld [vmem:[#allocation7 + $0x70] sm:$0xff]
        %v946 = vld [vmem:[#allocation7 + $0x78] sm:$0xff]
        %v947 = vld [vmem:[#allocation7 + $0x80] sm:$0xff]
        %v948 = vld [vmem:[#allocation7 + $0x88] sm:$0xff]
        %v949 = vld [vmem:[#allocation7 + $0x90] sm:$0xff]
        %v950 = vld [vmem:[#allocation7 + $0x98] sm:$0xff]
        %v951 = vld [vmem:[#allocation7 + $0xa0] sm:$0xff]
        %v952 = vld [vmem:[#allocation7 + $0xa8] sm:$0xff]
        %v953 = vld [vmem:[#allocation7 + $0xb0] sm:$0xff]
        %v954 = vld [vmem:[#allocation7 + $0xb8] sm:$0xff]
        %v955 = vld [vmem:[#allocation7 + $0xc0] sm:$0xff]
        %v956 = vld [vmem:[#allocation7 + $0xc8] sm:$0xff]
        %v957 = vld [vmem:[#allocation7 + $0xd0] sm:$0xff]
        %v958 = vld [vmem:[#allocation7 + $0xd8] sm:$0xff]
        %v959 = vld [vmem:[#allocation7 + $0xe0] sm:$0xff]
        %v960 = vld [vmem:[#allocation7 + $0xe8] sm:$0xff]
        %v961 = vld [vmem:[#allocation7 + $0xf0] sm:$0xff]
        %v962 = vld [vmem:[#allocation7 + $0xf8] sm:$0xff]
        %v963 = vld [vmem:[#allocation7 + $0x100] sm:$0xff]
        %v964 = vld [vmem:[#allocation7 + $0x108] sm:$0xff]
        %v965 = vld [vmem:[#allocation7 + $0x110] sm:$0xff]
        %v966 = vld [vmem:[#allocation7 + $0x118] sm:$0xff]
        %v967 = vld [vmem:[#allocation7 + $0x120] sm:$0xff]
        %v968 = vld [vmem:[#allocation7 + $0x128] sm:$0xff]
        %v969 = vld [vmem:[#allocation7 + $0x130] sm:$0xff]
        %v970 = vld [vmem:[#allocation7 + $0x138] sm:$0xff]
        %v971 = vld [vmem:[#allocation7 + $0x140] sm:$0xff]
        %v972 = vld [vmem:[#allocation7 + $0x148] sm:$0xff]
        %v973 = vld [vmem:[#allocation7 + $0x150] sm:$0xff]
        %v974 = vld [vmem:[#allocation7 + $0x158] sm:$0xff]
        %v975 = vld [vmem:[#allocation7 + $0x160] sm:$0xff]
        %v976 = vld [vmem:[#allocation7 + $0x168] sm:$0xff]
        %v977 = vld [vmem:[#allocation7 + $0x170] sm:$0xff]
        %v978 = vld [vmem:[#allocation7 + $0x178] sm:$0xff]
        %v979 = vld [vmem:[#allocation7 + $0x180] sm:$0xff]
        %v980 = vld [vmem:[#allocation7 + $0x188] sm:$0xff]
        %v981 = vld [vmem:[#allocation7 + $0x190] sm:$0xff]
        %v982 = vld [vmem:[#allocation7 + $0x198] sm:$0xff]
        %v983 = vld [vmem:[#allocation7 + $0x1a0] sm:$0xff]
        %v984 = vld [vmem:[#allocation7 + $0x1a8] sm:$0xff]
        %v985 = vld [vmem:[#allocation7 + $0x1b0] sm:$0xff]
        %v986 = vld [vmem:[#allocation7 + $0x1b8] sm:$0xff]
        %v987 = vld [vmem:[#allocation7 + $0x1c0] sm:$0xff]
        %v988 = vld [vmem:[#allocation7 + $0x1c8] sm:$0xff]
        %v989 = vld [vmem:[#allocation7 + $0x1d0] sm:$0xff]
        %v990 = vld [vmem:[#allocation7 + $0x1d8] sm:$0xff]
        %v991 = vld [vmem:[#allocation7 + $0x1e0] sm:$0xff]
        %v992 = vld [vmem:[#allocation7 + $0x1e8] sm:$0xff]
        %v993 = vld [vmem:[#allocation7 + $0x1f0] sm:$0xff]
        %v994 = vld [vmem:[#allocation7 + $0x1f8] sm:$0xff]
        %v995 = vld [vmem:[#allocation9] sm:$0x3]
        %v997 = vlaneseq
        %v998 = vshrl.u32 %v997, 7
        %v999 = vsub.s32 0, %v998
        %v1000 = vrot.slane %v995, %v999
        %v1001 = vlaneseq
        %v1002 = vshrl.u32 %v1001, 7
        %v1003 = vsub.s32 1, %v1002
        %v1004 = vrot.slane %v995, %v1003
        %v1071 = vunpack.c.l.b16 %v931
        %v1072 = vunpack.c.h.b16 %v931
        %v1073 = vunpack.c.l.b16 %v932
        %v1074 = vunpack.c.h.b16 %v932
        %v1075 = vunpack.c.l.b16 %v933
        %v1076 = vunpack.c.h.b16 %v933
        %v1077 = vunpack.c.l.b16 %v934
        %v1078 = vunpack.c.h.b16 %v934
        %v1079 = vunpack.c.l.b16 %v935
        %v1080 = vunpack.c.h.b16 %v935
        %v1081 = vunpack.c.l.b16 %v936
        %v1082 = vunpack.c.h.b16 %v936
        %v1083 = vunpack.c.l.b16 %v937
        %v1084 = vunpack.c.h.b16 %v937
        %v1085 = vunpack.c.l.b16 %v938
        %v1086 = vunpack.c.h.b16 %v938
        %v1087 = vunpack.c.l.b16 %v939
        %v1088 = vunpack.c.h.b16 %v939
        %v1089 = vunpack.c.l.b16 %v940
        %v1090 = vunpack.c.h.b16 %v940
        %v1091 = vunpack.c.l.b16 %v941
        %v1092 = vunpack.c.h.b16 %v941
        %v1093 = vunpack.c.l.b16 %v942
        %v1094 = vunpack.c.h.b16 %v942
        %v1095 = vunpack.c.l.b16 %v943
        %v1096 = vunpack.c.h.b16 %v943
        %v1097 = vunpack.c.l.b16 %v944
        %v1098 = vunpack.c.h.b16 %v944
        %v1099 = vunpack.c.l.b16 %v945
        %v1100 = vunpack.c.h.b16 %v945
        %v1101 = vunpack.c.l.b16 %v946
        %v1102 = vunpack.c.h.b16 %v946
        %v1103 = vunpack.c.l.b16 %v947
        %v1104 = vunpack.c.h.b16 %v947
        %v1105 = vunpack.c.l.b16 %v948
        %v1106 = vunpack.c.h.b16 %v948
        %v1107 = vunpack.c.l.b16 %v949
        %v1108 = vunpack.c.h.b16 %v949
        %v1109 = vunpack.c.l.b16 %v950
        %v1110 = vunpack.c.h.b16 %v950
        %v1111 = vunpack.c.l.b16 %v951
        %v1112 = vunpack.c.h.b16 %v951
        %v1113 = vunpack.c.l.b16 %v952
        %v1114 = vunpack.c.h.b16 %v952
        %v1115 = vunpack.c.l.b16 %v953
        %v1116 = vunpack.c.h.b16 %v953
        %v1117 = vunpack.c.l.b16 %v954
        %v1118 = vunpack.c.h.b16 %v954
        %v1119 = vunpack.c.l.b16 %v955
        %v1120 = vunpack.c.h.b16 %v955
        %v1121 = vunpack.c.l.b16 %v956
        %v1122 = vunpack.c.h.b16 %v956
        %v1123 = vunpack.c.l.b16 %v957
        %v1124 = vunpack.c.h.b16 %v957
        %v1125 = vunpack.c.l.b16 %v958
        %v1126 = vunpack.c.h.b16 %v958
        %v1127 = vunpack.c.l.b16 %v959
        %v1128 = vunpack.c.h.b16 %v959
        %v1129 = vunpack.c.l.b16 %v960
        %v1130 = vunpack.c.h.b16 %v960
        %v1131 = vunpack.c.l.b16 %v961
        %v1132 = vunpack.c.h.b16 %v961
        %v1133 = vunpack.c.l.b16 %v962
        %v1134 = vunpack.c.h.b16 %v962
        %v1135 = vunpack.c.l.b16 %v963
        %v1136 = vunpack.c.h.b16 %v963
        %v1137 = vunpack.c.l.b16 %v964
        %v1138 = vunpack.c.h.b16 %v964
        %v1139 = vunpack.c.l.b16 %v965
        %v1140 = vunpack.c.h.b16 %v965
        %v1141 = vunpack.c.l.b16 %v966
        %v1142 = vunpack.c.h.b16 %v966
        %v1143 = vunpack.c.l.b16 %v967
        %v1144 = vunpack.c.h.b16 %v967
        %v1145 = vunpack.c.l.b16 %v968
        %v1146 = vunpack.c.h.b16 %v968
        %v1147 = vunpack.c.l.b16 %v969
        %v1148 = vunpack.c.h.b16 %v969
        %v1149 = vunpack.c.l.b16 %v970
        %v1150 = vunpack.c.h.b16 %v970
        %v1151 = vunpack.c.l.b16 %v971
        %v1152 = vunpack.c.h.b16 %v971
        %v1153 = vunpack.c.l.b16 %v972
        %v1154 = vunpack.c.h.b16 %v972
        %v1155 = vunpack.c.l.b16 %v973
        %v1156 = vunpack.c.h.b16 %v973
        %v1157 = vunpack.c.l.b16 %v974
        %v1158 = vunpack.c.h.b16 %v974
        %v1159 = vunpack.c.l.b16 %v975
        %v1160 = vunpack.c.h.b16 %v975
        %v1161 = vunpack.c.l.b16 %v976
        %v1162 = vunpack.c.h.b16 %v976
        %v1163 = vunpack.c.l.b16 %v977
        %v1164 = vunpack.c.h.b16 %v977
        %v1165 = vunpack.c.l.b16 %v978
        %v1166 = vunpack.c.h.b16 %v978
        %v1167 = vunpack.c.l.b16 %v979
        %v1168 = vunpack.c.h.b16 %v979
        %v1169 = vunpack.c.l.b16 %v980
        %v1170 = vunpack.c.h.b16 %v980
        %v1171 = vunpack.c.l.b16 %v981
        %v1172 = vunpack.c.h.b16 %v981
        %v1173 = vunpack.c.l.b16 %v982
        %v1174 = vunpack.c.h.b16 %v982
        %v1175 = vunpack.c.l.b16 %v983
        %v1176 = vunpack.c.h.b16 %v983
        %v1177 = vunpack.c.l.b16 %v984
        %v1178 = vunpack.c.h.b16 %v984
        %v1179 = vunpack.c.l.b16 %v985
        %v1180 = vunpack.c.h.b16 %v985
        %v1181 = vunpack.c.l.b16 %v986
        %v1182 = vunpack.c.h.b16 %v986
        %v1183 = vunpack.c.l.b16 %v987
        %v1184 = vunpack.c.h.b16 %v987
        %v1185 = vunpack.c.l.b16 %v988
        %v1186 = vunpack.c.h.b16 %v988
        %v1187 = vunpack.c.l.b16 %v989
        %v1188 = vunpack.c.h.b16 %v989
        %v1189 = vunpack.c.l.b16 %v990
        %v1190 = vunpack.c.h.b16 %v990
        %v1191 = vunpack.c.l.b16 %v991
        %v1192 = vunpack.c.h.b16 %v991
        %v1193 = vunpack.c.l.b16 %v992
        %v1194 = vunpack.c.h.b16 %v992
        %v1195 = vunpack.c.l.b16 %v993
        %v1196 = vunpack.c.h.b16 %v993
        %v1197 = vunpack.c.l.b16 %v994
        %v1198 = vunpack.c.h.b16 %v994
        %v1199 = vpack.c.b16 %v1073, %v1071
        %v1200 = vpack.c.b16 %v1074, %v1072
        %v1201 = vpack.c.b16 %v1077, %v1075
        %v1202 = vpack.c.b16 %v1078, %v1076
        %v1203 = vpack.c.b16 %v1081, %v1079
        %v1204 = vpack.c.b16 %v1082, %v1080
        %v1205 = vpack.c.b16 %v1085, %v1083
        %v1206 = vpack.c.b16 %v1086, %v1084
        %v1207 = vpack.c.b16 %v1089, %v1087
        %v1208 = vpack.c.b16 %v1090, %v1088
        %v1209 = vpack.c.b16 %v1093, %v1091
        %v1210 = vpack.c.b16 %v1094, %v1092
        %v1211 = vpack.c.b16 %v1097, %v1095
        %v1212 = vpack.c.b16 %v1098, %v1096
        %v1213 = vpack.c.b16 %v1101, %v1099
        %v1214 = vpack.c.b16 %v1102, %v1100
        %v1215 = vpack.c.b16 %v1105, %v1103
        %v1216 = vpack.c.b16 %v1106, %v1104
        %v1217 = vpack.c.b16 %v1109, %v1107
        %v1218 = vpack.c.b16 %v1110, %v1108
        %v1219 = vpack.c.b16 %v1113, %v1111
        %v1220 = vpack.c.b16 %v1114, %v1112
        %v1221 = vpack.c.b16 %v1117, %v1115
        %v1222 = vpack.c.b16 %v1118, %v1116
        %v1223 = vpack.c.b16 %v1121, %v1119
        %v1224 = vpack.c.b16 %v1122, %v1120
        %v1225 = vpack.c.b16 %v1125, %v1123
        %v1226 = vpack.c.b16 %v1126, %v1124
        %v1227 = vpack.c.b16 %v1129, %v1127
        %v1228 = vpack.c.b16 %v1130, %v1128
        %v1229 = vpack.c.b16 %v1133, %v1131
        %v1230 = vpack.c.b16 %v1134, %v1132
        %v1231 = vpack.c.b16 %v1137, %v1135
        %v1232 = vpack.c.b16 %v1138, %v1136
        %v1233 = vpack.c.b16 %v1141, %v1139
        %v1234 = vpack.c.b16 %v1142, %v1140
        %v1235 = vpack.c.b16 %v1145, %v1143
        %v1236 = vpack.c.b16 %v1146, %v1144
        %v1237 = vpack.c.b16 %v1149, %v1147
        %v1238 = vpack.c.b16 %v1150, %v1148
        %v1239 = vpack.c.b16 %v1153, %v1151
        %v1240 = vpack.c.b16 %v1154, %v1152
        %v1241 = vpack.c.b16 %v1157, %v1155
        %v1242 = vpack.c.b16 %v1158, %v1156
        %v1243 = vpack.c.b16 %v1161, %v1159
        %v1244 = vpack.c.b16 %v1162, %v1160
        %v1245 = vpack.c.b16 %v1165, %v1163
        %v1246 = vpack.c.b16 %v1166, %v1164
        %v1247 = vpack.c.b16 %v1169, %v1167
        %v1248 = vpack.c.b16 %v1170, %v1168
        %v1249 = vpack.c.b16 %v1173, %v1171
        %v1250 = vpack.c.b16 %v1174, %v1172
        %v1251 = vpack.c.b16 %v1177, %v1175
        %v1252 = vpack.c.b16 %v1178, %v1176
        %v1253 = vpack.c.b16 %v1181, %v1179
        %v1254 = vpack.c.b16 %v1182, %v1180
        %v1255 = vpack.c.b16 %v1185, %v1183
        %v1256 = vpack.c.b16 %v1186, %v1184
        %v1257 = vpack.c.b16 %v1189, %v1187
        %v1258 = vpack.c.b16 %v1190, %v1188
        %v1259 = vpack.c.b16 %v1193, %v1191
        %v1260 = vpack.c.b16 %v1194, %v1192
        %v1261 = vpack.c.b16 %v1197, %v1195
        %v1262 = vpack.c.b16 %v1198, %v1196
        %1327 = vmatprep.subr.bf16.mxu0 %v1214
        %1328 = vmatpush1.bf16.msra.mxu0 %v1213
        %1329 = vmatprep.subr.bf16.mxu0 %v1212
        %1330 = vmatpush1.bf16.msra.mxu0 %v1211
        %1331 = vmatprep.subr.bf16.mxu0 %v1210
        %1332 = vmatpush1.bf16.msra.mxu0 %v1209
        %1333 = vmatprep.subr.bf16.mxu0 %v1208
        %1334 = vmatpush1.bf16.msra.mxu0 %v1207
        %1335 = vmatprep.subr.bf16.mxu0 %v1206
        %1336 = vmatpush1.bf16.msra.mxu0 %v1205
        %1337 = vmatprep.subr.bf16.mxu0 %v1204
        %1338 = vmatpush1.bf16.msra.mxu0 %v1203
        %1339 = vmatprep.subr.bf16.mxu0 %v1202
        %1340 = vmatpush1.bf16.msra.mxu0 %v1201
        %1341 = vmatprep.subr.bf16.mxu0 %v1200
        %1342 = vmatpush1.bf16.msra.mxu0 %v1199
        %1343 = vmatprep.subr.bf16.mxu0 %v1230
        %1344 = vmatpush2.bf16.msra.mxu0 %v1229
        %1345 = vmatprep.subr.bf16.mxu0 %v1228
        %1346 = vmatpush2.bf16.msra.mxu0 %v1227
        %1347 = vmatprep.subr.bf16.mxu0 %v1226
        %1348 = vmatpush2.bf16.msra.mxu0 %v1225
        %1349 = vmatprep.subr.bf16.mxu0 %v1224
        %1350 = vmatpush2.bf16.msra.mxu0 %v1223
        %1351 = vmatprep.subr.bf16.mxu0 %v1222
        %1352 = vmatpush2.bf16.msra.mxu0 %v1221
        %1353 = vmatprep.subr.bf16.mxu0 %v1220
        %1354 = vmatpush2.bf16.msra.mxu0 %v1219
        %1355 = vmatprep.subr.bf16.mxu0 %v1218
        %1356 = vmatpush2.bf16.msra.mxu0 %v1217
        %1357 = vmatprep.subr.bf16.mxu0 %v1216
        %1358 = vmatpush2.bf16.msra.mxu0 %v1215
        %1359 = vmatprep.mubr.bf16.mxu0 %v868
        %1360 = vmatmul.mubr.bf16.gmra.mxu0 %v867
        %v1361 = vpop.f32.mrf.mxu0
        %v1362 = vadd.f32 %v1000, %v1361
        %v1363 = vpop.f32.mrf.mxu0
        %v1364 = vadd.f32 %v1004, %v1363
        %v1365 = vpop.f32.mrf.mxu0
        %v1366 = vadd.f32 %v1000, %v1365
        %v1367 = vpop.f32.mrf.mxu0
        %v1368 = vadd.f32 %v1004, %v1367
        %1369 = vmatprep.mubr.bf16.mxu0 %v872
        %1370 = vmatmul.mubr.bf16.gmra.mxu0 %v871
        %v1371 = vpop.f32.mrf.mxu0
        %v1372 = vadd.f32 %v1000, %v1371
        %v1373 = vpop.f32.mrf.mxu0
        %v1374 = vadd.f32 %v1004, %v1373
        %v1375 = vpop.f32.mrf.mxu0
        %v1376 = vadd.f32 %v1000, %v1375
        %v1377 = vpop.f32.mrf.mxu0
        %v1378 = vadd.f32 %v1004, %v1377
        %1379 = vmatprep.mubr.bf16.mxu0 %v876
        %1380 = vmatmul.mubr.bf16.gmra.mxu0 %v875
        %v1381 = vpop.f32.mrf.mxu0
        %v1382 = vadd.f32 %v1000, %v1381
        %v1383 = vpop.f32.mrf.mxu0
        %v1384 = vadd.f32 %v1004, %v1383
        %v1385 = vpop.f32.mrf.mxu0
        %v1386 = vadd.f32 %v1000, %v1385
        %v1387 = vpop.f32.mrf.mxu0
        %v1388 = vadd.f32 %v1004, %v1387
        %1389 = vmatprep.mubr.bf16.mxu0 %v880
        %1390 = vmatmul.mubr.bf16.gmra.mxu0 %v879
        %v1391 = vpop.f32.mrf.mxu0
        %v1392 = vadd.f32 %v1000, %v1391
        %v1393 = vpop.f32.mrf.mxu0
        %v1394 = vadd.f32 %v1004, %v1393
        %v1395 = vpop.f32.mrf.mxu0
        %v1396 = vadd.f32 %v1000, %v1395
        %v1397 = vpop.f32.mrf.mxu0
        %v1398 = vadd.f32 %v1004, %v1397
        %1399 = vmatprep.mubr.bf16.mxu0 %v884
        %1400 = vmatmul.mubr.bf16.gmra.mxu0 %v883
        %v1401 = vpop.f32.mrf.mxu0
        %v1402 = vadd.f32 %v1000, %v1401
        %v1403 = vpop.f32.mrf.mxu0
        %v1404 = vadd.f32 %v1004, %v1403
        %v1405 = vpop.f32.mrf.mxu0
        %v1406 = vadd.f32 %v1000, %v1405
        %v1407 = vpop.f32.mrf.mxu0
        %v1408 = vadd.f32 %v1004, %v1407
        %1409 = vmatprep.mubr.bf16.mxu0 %v888
        %1410 = vmatmul.mubr.bf16.gmra.mxu0 %v887
        %v1411 = vpop.f32.mrf.mxu0
        %v1412 = vadd.f32 %v1000, %v1411
        %v1413 = vpop.f32.mrf.mxu0
        %v1414 = vadd.f32 %v1004, %v1413
        %v1415 = vpop.f32.mrf.mxu0
        %v1416 = vadd.f32 %v1000, %v1415
        %v1417 = vpop.f32.mrf.mxu0
        %v1418 = vadd.f32 %v1004, %v1417
        %1419 = vmatprep.mubr.bf16.mxu0 %v892
        %1420 = vmatmul.mubr.bf16.gmra.mxu0 %v891
        %v1421 = vpop.f32.mrf.mxu0
        %v1422 = vadd.f32 %v1000, %v1421
        %v1423 = vpop.f32.mrf.mxu0
        %v1424 = vadd.f32 %v1004, %v1423
        %v1425 = vpop.f32.mrf.mxu0
        %v1426 = vadd.f32 %v1000, %v1425
        %v1427 = vpop.f32.mrf.mxu0
        %v1428 = vadd.f32 %v1004, %v1427
        %1429 = vmatprep.mubr.bf16.mxu0 %v896
        %1430 = vmatmul.mubr.bf16.gmra.mxu0 %v895
        %v1431 = vpop.f32.mrf.mxu0
        %v1432 = vadd.f32 %v1000, %v1431
        %v1433 = vpop.f32.mrf.mxu0
        %v1434 = vadd.f32 %v1004, %v1433
        %v1435 = vpop.f32.mrf.mxu0
        %v1436 = vadd.f32 %v1000, %v1435
        %v1437 = vpop.f32.mrf.mxu0
        %v1438 = vadd.f32 %v1004, %v1437
        %1439 = vmatprep.mubr.bf16.mxu0 %v900
        %1440 = vmatmul.mubr.bf16.gmra.mxu0 %v899
        %v1441 = vpop.f32.mrf.mxu0
        %v1442 = vadd.f32 %v1000, %v1441
        %v1443 = vpop.f32.mrf.mxu0
        %v1444 = vadd.f32 %v1004, %v1443
        %v1445 = vpop.f32.mrf.mxu0
        %v1446 = vadd.f32 %v1000, %v1445
        %v1447 = vpop.f32.mrf.mxu0
        %v1448 = vadd.f32 %v1004, %v1447
        %1449 = vmatprep.mubr.bf16.mxu0 %v904
        %1450 = vmatmul.mubr.bf16.gmra.mxu0 %v903
        %v1451 = vpop.f32.mrf.mxu0
        %v1452 = vadd.f32 %v1000, %v1451
        %v1453 = vpop.f32.mrf.mxu0
        %v1454 = vadd.f32 %v1004, %v1453
        %v1455 = vpop.f32.mrf.mxu0
        %v1456 = vadd.f32 %v1000, %v1455
        %v1457 = vpop.f32.mrf.mxu0
        %v1458 = vadd.f32 %v1004, %v1457
        %1459 = vmatprep.mubr.bf16.mxu0 %v908
        %1460 = vmatmul.mubr.bf16.gmra.mxu0 %v907
        %v1461 = vpop.f32.mrf.mxu0
        %v1462 = vadd.f32 %v1000, %v1461
        %v1463 = vpop.f32.mrf.mxu0
        %v1464 = vadd.f32 %v1004, %v1463
        %v1465 = vpop.f32.mrf.mxu0
        %v1466 = vadd.f32 %v1000, %v1465
        %v1467 = vpop.f32.mrf.mxu0
        %v1468 = vadd.f32 %v1004, %v1467
        %1469 = vmatprep.mubr.bf16.mxu0 %v912
        %1470 = vmatmul.mubr.bf16.gmra.mxu0 %v911
        %v1471 = vpop.f32.mrf.mxu0
        %v1472 = vadd.f32 %v1000, %v1471
        %v1473 = vpop.f32.mrf.mxu0
        %v1474 = vadd.f32 %v1004, %v1473
        %v1475 = vpop.f32.mrf.mxu0
        %v1476 = vadd.f32 %v1000, %v1475
        %v1477 = vpop.f32.mrf.mxu0
        %v1478 = vadd.f32 %v1004, %v1477
        %1479 = vmatprep.mubr.bf16.mxu0 %v916
        %1480 = vmatmul.mubr.bf16.gmra.mxu0 %v915
        %v1481 = vpop.f32.mrf.mxu0
        %v1482 = vadd.f32 %v1000, %v1481
        %v1483 = vpop.f32.mrf.mxu0
        %v1484 = vadd.f32 %v1004, %v1483
        %v1485 = vpop.f32.mrf.mxu0
        %v1486 = vadd.f32 %v1000, %v1485
        %v1487 = vpop.f32.mrf.mxu0
        %v1488 = vadd.f32 %v1004, %v1487
        %1489 = vmatprep.mubr.bf16.mxu0 %v920
        %1490 = vmatmul.mubr.bf16.gmra.mxu0 %v919
        %v1491 = vpop.f32.mrf.mxu0
        %v1492 = vadd.f32 %v1000, %v1491
        %v1493 = vpop.f32.mrf.mxu0
        %v1494 = vadd.f32 %v1004, %v1493
        %v1495 = vpop.f32.mrf.mxu0
        %v1496 = vadd.f32 %v1000, %v1495
        %v1497 = vpop.f32.mrf.mxu0
        %v1498 = vadd.f32 %v1004, %v1497
        %1499 = vmatprep.mubr.bf16.mxu0 %v924
        %1500 = vmatmul.mubr.bf16.gmra.mxu0 %v923
        %v1501 = vpop.f32.mrf.mxu0
        %v1502 = vadd.f32 %v1000, %v1501
        %v1503 = vpop.f32.mrf.mxu0
        %v1504 = vadd.f32 %v1004, %v1503
        %v1505 = vpop.f32.mrf.mxu0
        %v1506 = vadd.f32 %v1000, %v1505
        %v1507 = vpop.f32.mrf.mxu0
        %v1508 = vadd.f32 %v1004, %v1507
        %1509 = vmatprep.mubr.bf16.mxu0 %v928
        %1510 = vmatmul.mubr.bf16.gmra.mxu0 %v927
        %v1511 = vpop.f32.mrf.mxu0
        %v1512 = vadd.f32 %v1000, %v1511
        %v1513 = vpop.f32.mrf.mxu0
        %v1514 = vadd.f32 %v1004, %v1513
        %v1515 = vpop.f32.mrf.mxu0
        %v1516 = vadd.f32 %v1000, %v1515
        %v1517 = vpop.f32.mrf.mxu0
        %v1518 = vadd.f32 %v1004, %v1517
        %1519 = vdwg.mxu0
        %1520 = vmatprep.subr.bf16.mxu0 %v1246
        %1521 = vmatpush1.bf16.msra.mxu0 %v1245
        %1522 = vmatprep.subr.bf16.mxu0 %v1244
        %1523 = vmatpush1.bf16.msra.mxu0 %v1243
        %1524 = vmatprep.subr.bf16.mxu0 %v1242
        %1525 = vmatpush1.bf16.msra.mxu0 %v1241
        %1526 = vmatprep.subr.bf16.mxu0 %v1240
        %1527 = vmatpush1.bf16.msra.mxu0 %v1239
        %1528 = vmatprep.subr.bf16.mxu0 %v1238
        %1529 = vmatpush1.bf16.msra.mxu0 %v1237
        %1530 = vmatprep.subr.bf16.mxu0 %v1236
        %1531 = vmatpush1.bf16.msra.mxu0 %v1235
        %1532 = vmatprep.subr.bf16.mxu0 %v1234
        %1533 = vmatpush1.bf16.msra.mxu0 %v1233
        %1534 = vmatprep.subr.bf16.mxu0 %v1232
        %1535 = vmatpush1.bf16.msra.mxu0 %v1231
        %1536 = vmatprep.subr.bf16.mxu0 %v1262
        %1537 = vmatpush2.bf16.msra.mxu0 %v1261
        %1538 = vmatprep.subr.bf16.mxu0 %v1260
        %1539 = vmatpush2.bf16.msra.mxu0 %v1259
        %1540 = vmatprep.subr.bf16.mxu0 %v1258
        %1541 = vmatpush2.bf16.msra.mxu0 %v1257
        %1542 = vmatprep.subr.bf16.mxu0 %v1256
        %1543 = vmatpush2.bf16.msra.mxu0 %v1255
        %1544 = vmatprep.subr.bf16.mxu0 %v1254
        %1545 = vmatpush2.bf16.msra.mxu0 %v1253
        %1546 = vmatprep.subr.bf16.mxu0 %v1252
        %1547 = vmatpush2.bf16.msra.mxu0 %v1251
        %1548 = vmatprep.subr.bf16.mxu0 %v1250
        %1549 = vmatpush2.bf16.msra.mxu0 %v1249
        %1550 = vmatprep.subr.bf16.mxu0 %v1248
        %1551 = vmatpush2.bf16.msra.mxu0 %v1247
        %1552 = vmatprep.mubr.bf16.mxu0 %v870
        %1553 = vmatmul.mubr.bf16.gmra.mxu0 %v869
        %v1554 = vpop.f32.mrf.mxu0
        %v1555 = vadd.f32 %v1362, %v1554
        %v1556 = vpop.f32.mrf.mxu0
        %v1557 = vadd.f32 %v1364, %v1556
        %v1558 = vpop.f32.mrf.mxu0
        %v1559 = vadd.f32 %v1366, %v1558
        %v1560 = vpop.f32.mrf.mxu0
        %v1561 = vadd.f32 %v1368, %v1560
        %1562 = vmatprep.mubr.bf16.mxu0 %v874
        %1563 = vmatmul.mubr.bf16.gmra.mxu0 %v873
        %v1564 = vpop.f32.mrf.mxu0
        %v1565 = vadd.f32 %v1372, %v1564
        %v1566 = vpop.f32.mrf.mxu0
        %v1567 = vadd.f32 %v1374, %v1566
        %v1568 = vpop.f32.mrf.mxu0
        %v1569 = vadd.f32 %v1376, %v1568
        %v1570 = vpop.f32.mrf.mxu0
        %v1571 = vadd.f32 %v1378, %v1570
        %1572 = vmatprep.mubr.bf16.mxu0 %v878
        %1573 = vmatmul.mubr.bf16.gmra.mxu0 %v877
        %v1574 = vpop.f32.mrf.mxu0
        %v1575 = vadd.f32 %v1382, %v1574
        %v1576 = vpop.f32.mrf.mxu0
        %v1577 = vadd.f32 %v1384, %v1576
        %v1578 = vpop.f32.mrf.mxu0
        %v1579 = vadd.f32 %v1386, %v1578
        %v1580 = vpop.f32.mrf.mxu0
        %v1581 = vadd.f32 %v1388, %v1580
        %1582 = vmatprep.mubr.bf16.mxu0 %v882
        %1583 = vmatmul.mubr.bf16.gmra.mxu0 %v881
        %v1584 = vpop.f32.mrf.mxu0
        %v1585 = vadd.f32 %v1392, %v1584
        %v1586 = vpop.f32.mrf.mxu0
        %v1587 = vadd.f32 %v1394, %v1586
        %v1588 = vpop.f32.mrf.mxu0
        %v1589 = vadd.f32 %v1396, %v1588
        %v1590 = vpop.f32.mrf.mxu0
        %v1591 = vadd.f32 %v1398, %v1590
        %1592 = vmatprep.mubr.bf16.mxu0 %v886
        %1593 = vmatmul.mubr.bf16.gmra.mxu0 %v885
        %v1594 = vpop.f32.mrf.mxu0
        %v1595 = vadd.f32 %v1402, %v1594
        %v1596 = vpop.f32.mrf.mxu0
        %v1597 = vadd.f32 %v1404, %v1596
        %v1598 = vpop.f32.mrf.mxu0
        %v1599 = vadd.f32 %v1406, %v1598
        %v1600 = vpop.f32.mrf.mxu0
        %v1601 = vadd.f32 %v1408, %v1600
        %1602 = vmatprep.mubr.bf16.mxu0 %v890
        %1603 = vmatmul.mubr.bf16.gmra.mxu0 %v889
        %v1604 = vpop.f32.mrf.mxu0
        %v1605 = vadd.f32 %v1412, %v1604
        %v1606 = vpop.f32.mrf.mxu0
        %v1607 = vadd.f32 %v1414, %v1606
        %v1608 = vpop.f32.mrf.mxu0
        %v1609 = vadd.f32 %v1416, %v1608
        %v1610 = vpop.f32.mrf.mxu0
        %v1611 = vadd.f32 %v1418, %v1610
        %1612 = vmatprep.mubr.bf16.mxu0 %v894
        %1613 = vmatmul.mubr.bf16.gmra.mxu0 %v893
        %v1614 = vpop.f32.mrf.mxu0
        %v1615 = vadd.f32 %v1422, %v1614
        %v1616 = vpop.f32.mrf.mxu0
        %v1617 = vadd.f32 %v1424, %v1616
        %v1618 = vpop.f32.mrf.mxu0
        %v1619 = vadd.f32 %v1426, %v1618
        %v1620 = vpop.f32.mrf.mxu0
        %v1621 = vadd.f32 %v1428, %v1620
        %1622 = vmatprep.mubr.bf16.mxu0 %v898
        %1623 = vmatmul.mubr.bf16.gmra.mxu0 %v897
        %v1624 = vpop.f32.mrf.mxu0
        %v1625 = vadd.f32 %v1432, %v1624
        %v1626 = vpop.f32.mrf.mxu0
        %v1627 = vadd.f32 %v1434, %v1626
        %v1628 = vpop.f32.mrf.mxu0
        %v1629 = vadd.f32 %v1436, %v1628
        %v1630 = vpop.f32.mrf.mxu0
        %v1631 = vadd.f32 %v1438, %v1630
        %1632 = vmatprep.mubr.bf16.mxu0 %v902
        %1633 = vmatmul.mubr.bf16.gmra.mxu0 %v901
        %v1634 = vpop.f32.mrf.mxu0
        %v1635 = vadd.f32 %v1442, %v1634
        %v1636 = vpop.f32.mrf.mxu0
        %v1637 = vadd.f32 %v1444, %v1636
        %v1638 = vpop.f32.mrf.mxu0
        %v1639 = vadd.f32 %v1446, %v1638
        %v1640 = vpop.f32.mrf.mxu0
        %v1641 = vadd.f32 %v1448, %v1640
        %1642 = vmatprep.mubr.bf16.mxu0 %v906
        %1643 = vmatmul.mubr.bf16.gmra.mxu0 %v905
        %v1644 = vpop.f32.mrf.mxu0
        %v1645 = vadd.f32 %v1452, %v1644
        %v1646 = vpop.f32.mrf.mxu0
        %v1647 = vadd.f32 %v1454, %v1646
        %v1648 = vpop.f32.mrf.mxu0
        %v1649 = vadd.f32 %v1456, %v1648
        %v1650 = vpop.f32.mrf.mxu0
        %v1651 = vadd.f32 %v1458, %v1650
        %1652 = vmatprep.mubr.bf16.mxu0 %v910
        %1653 = vmatmul.mubr.bf16.gmra.mxu0 %v909
        %v1654 = vpop.f32.mrf.mxu0
        %v1655 = vadd.f32 %v1462, %v1654
        %v1656 = vpop.f32.mrf.mxu0
        %v1657 = vadd.f32 %v1464, %v1656
        %v1658 = vpop.f32.mrf.mxu0
        %v1659 = vadd.f32 %v1466, %v1658
        %v1660 = vpop.f32.mrf.mxu0
        %v1661 = vadd.f32 %v1468, %v1660
        %1662 = vmatprep.mubr.bf16.mxu0 %v914
        %1663 = vmatmul.mubr.bf16.gmra.mxu0 %v913
        %v1664 = vpop.f32.mrf.mxu0
        %v1665 = vadd.f32 %v1472, %v1664
        %v1666 = vpop.f32.mrf.mxu0
        %v1667 = vadd.f32 %v1474, %v1666
        %v1668 = vpop.f32.mrf.mxu0
        %v1669 = vadd.f32 %v1476, %v1668
        %v1670 = vpop.f32.mrf.mxu0
        %v1671 = vadd.f32 %v1478, %v1670
        %1672 = vmatprep.mubr.bf16.mxu0 %v918
        %1673 = vmatmul.mubr.bf16.gmra.mxu0 %v917
        %v1674 = vpop.f32.mrf.mxu0
        %v1675 = vadd.f32 %v1482, %v1674
        %v1676 = vpop.f32.mrf.mxu0
        %v1677 = vadd.f32 %v1484, %v1676
        %v1678 = vpop.f32.mrf.mxu0
        %v1679 = vadd.f32 %v1486, %v1678
        %v1680 = vpop.f32.mrf.mxu0
        %v1681 = vadd.f32 %v1488, %v1680
        %1682 = vmatprep.mubr.bf16.mxu0 %v922
        %1683 = vmatmul.mubr.bf16.gmra.mxu0 %v921
        %v1684 = vpop.f32.mrf.mxu0
        %v1685 = vadd.f32 %v1492, %v1684
        %v1686 = vpop.f32.mrf.mxu0
        %v1687 = vadd.f32 %v1494, %v1686
        %v1688 = vpop.f32.mrf.mxu0
        %v1689 = vadd.f32 %v1496, %v1688
        %v1690 = vpop.f32.mrf.mxu0
        %v1691 = vadd.f32 %v1498, %v1690
        %1692 = vmatprep.mubr.bf16.mxu0 %v926
        %1693 = vmatmul.mubr.bf16.gmra.mxu0 %v925
        %v1694 = vpop.f32.mrf.mxu0
        %v1695 = vadd.f32 %v1502, %v1694
        %v1696 = vpop.f32.mrf.mxu0
        %v1697 = vadd.f32 %v1504, %v1696
        %v1698 = vpop.f32.mrf.mxu0
        %v1699 = vadd.f32 %v1506, %v1698
        %v1700 = vpop.f32.mrf.mxu0
        %v1701 = vadd.f32 %v1508, %v1700
        %1702 = vmatprep.mubr.bf16.mxu0 %v930
        %1703 = vmatmul.mubr.bf16.gmra.mxu0 %v929
        %v1704 = vpop.f32.mrf.mxu0
        %v1705 = vadd.f32 %v1512, %v1704
        %v1706 = vpop.f32.mrf.mxu0
        %v1707 = vadd.f32 %v1514, %v1706
        %v1708 = vpop.f32.mrf.mxu0
        %v1709 = vadd.f32 %v1516, %v1708
        %v1710 = vpop.f32.mrf.mxu0
        %v1711 = vadd.f32 %v1518, %v1710
        %1712 = vdwg.mxu0
        %v1713 = vtanh.pop %v1555
        %v1714 = vtanh.pop %v1559
        %v1715 = vtanh.pop %v1565
        %v1716 = vtanh.pop %v1569
        %v1717 = vtanh.pop %v1575
        %v1718 = vtanh.pop %v1579
        %v1719 = vtanh.pop %v1585
        %v1720 = vtanh.pop %v1589
        %v1721 = vtanh.pop %v1595
        %v1722 = vtanh.pop %v1599
        %v1723 = vtanh.pop %v1605
        %v1724 = vtanh.pop %v1609
        %v1725 = vtanh.pop %v1615
        %v1726 = vtanh.pop %v1619
        %v1727 = vtanh.pop %v1625
        %v1728 = vtanh.pop %v1629
        %v1729 = vtanh.pop %v1635
        %v1730 = vtanh.pop %v1639
        %v1731 = vtanh.pop %v1645
        %v1732 = vtanh.pop %v1649
        %v1733 = vtanh.pop %v1655
        %v1734 = vtanh.pop %v1659
        %v1735 = vtanh.pop %v1665
        %v1736 = vtanh.pop %v1669
        %v1737 = vtanh.pop %v1675
        %v1738 = vtanh.pop %v1679
        %v1739 = vtanh.pop %v1685
        %v1740 = vtanh.pop %v1689
        %v1741 = vtanh.pop %v1695
        %v1742 = vtanh.pop %v1699
        %v1743 = vtanh.pop %v1705
        %v1744 = vtanh.pop %v1709
        %v1745 = vxor.u32 %v1557, 2147483648
        %v1746 = vxor.u32 %v1561, 2147483648
        %v1747 = vxor.u32 %v1567, 2147483648
        %v1748 = vxor.u32 %v1571, 2147483648
        %v1749 = vxor.u32 %v1577, 2147483648
        %v1750 = vxor.u32 %v1581, 2147483648
        %v1751 = vxor.u32 %v1587, 2147483648
        %v1752 = vxor.u32 %v1591, 2147483648
        %v1753 = vxor.u32 %v1597, 2147483648
        %v1754 = vxor.u32 %v1601, 2147483648
        %v1755 = vxor.u32 %v1607, 2147483648
        %v1756 = vxor.u32 %v1611, 2147483648
        %v1757 = vxor.u32 %v1617, 2147483648
        %v1758 = vxor.u32 %v1621, 2147483648
        %v1759 = vxor.u32 %v1627, 2147483648
        %v1760 = vxor.u32 %v1631, 2147483648
        %v1761 = vxor.u32 %v1637, 2147483648
        %v1762 = vxor.u32 %v1641, 2147483648
        %v1763 = vxor.u32 %v1647, 2147483648
        %v1764 = vxor.u32 %v1651, 2147483648
        %v1765 = vxor.u32 %v1657, 2147483648
        %v1766 = vxor.u32 %v1661, 2147483648
        %v1767 = vxor.u32 %v1667, 2147483648
        %v1768 = vxor.u32 %v1671, 2147483648
        %v1769 = vxor.u32 %v1677, 2147483648
        %v1770 = vxor.u32 %v1681, 2147483648
        %v1771 = vxor.u32 %v1687, 2147483648
        %v1772 = vxor.u32 %v1691, 2147483648
        %v1773 = vxor.u32 %v1697, 2147483648
        %v1774 = vxor.u32 %v1701, 2147483648
        %v1775 = vxor.u32 %v1707, 2147483648
        %v1776 = vxor.u32 %v1711, 2147483648
        %v1777 = vmul.f32 %v1745, 1.442695
        %v1778 = vpow.pop %v1777
        %v1779 = vmul.f32 %v1746, 1.442695
        %v1780 = vpow.pop %v1779
        %v1781 = vmul.f32 %v1747, 1.442695
        %v1782 = vpow.pop %v1781
        %v1783 = vmul.f32 %v1748, 1.442695
        %v1784 = vpow.pop %v1783
        %v1785 = vmul.f32 %v1749, 1.442695
        %v1786 = vpow.pop %v1785
        %v1787 = vmul.f32 %v1750, 1.442695
        %v1788 = vpow.pop %v1787
        %v1789 = vmul.f32 %v1751, 1.442695
        %v1790 = vpow.pop %v1789
        %v1791 = vmul.f32 %v1752, 1.442695
        %v1792 = vpow.pop %v1791
        %v1793 = vmul.f32 %v1753, 1.442695
        %v1794 = vpow.pop %v1793
        %v1795 = vmul.f32 %v1754, 1.442695
        %v1796 = vpow.pop %v1795
        %v1797 = vmul.f32 %v1755, 1.442695
        %v1798 = vpow.pop %v1797
        %v1799 = vmul.f32 %v1756, 1.442695
        %v1800 = vpow.pop %v1799
        %v1801 = vmul.f32 %v1757, 1.442695
        %v1802 = vpow.pop %v1801
        %v1803 = vmul.f32 %v1758, 1.442695
        %v1804 = vpow.pop %v1803
        %v1805 = vmul.f32 %v1759, 1.442695
        %v1806 = vpow.pop %v1805
        %v1807 = vmul.f32 %v1760, 1.442695
        %v1808 = vpow.pop %v1807
        %v1809 = vmul.f32 %v1761, 1.442695
        %v1810 = vpow.pop %v1809
        %v1811 = vmul.f32 %v1762, 1.442695
        %v1812 = vpow.pop %v1811
        %v1813 = vmul.f32 %v1763, 1.442695
        %v1814 = vpow.pop %v1813
        %v1815 = vmul.f32 %v1764, 1.442695
        %v1816 = vpow.pop %v1815
        %v1817 = vmul.f32 %v1765, 1.442695
        %v1818 = vpow.pop %v1817
        %v1819 = vmul.f32 %v1766, 1.442695
        %v1820 = vpow.pop %v1819
        %v1821 = vmul.f32 %v1767, 1.442695
        %v1822 = vpow.pop %v1821
        %v1823 = vmul.f32 %v1768, 1.442695
        %v1824 = vpow.pop %v1823
        %v1825 = vmul.f32 %v1769, 1.442695
        %v1826 = vpow.pop %v1825
        %v1827 = vmul.f32 %v1770, 1.442695
        %v1828 = vpow.pop %v1827
        %v1829 = vmul.f32 %v1771, 1.442695
        %v1830 = vpow.pop %v1829
        %v1831 = vmul.f32 %v1772, 1.442695
        %v1832 = vpow.pop %v1831
        %v1833 = vmul.f32 %v1773, 1.442695
        %v1834 = vpow.pop %v1833
        %v1835 = vmul.f32 %v1774, 1.442695
        %v1836 = vpow.pop %v1835
        %v1837 = vmul.f32 %v1775, 1.442695
        %v1838 = vpow.pop %v1837
        %v1839 = vmul.f32 %v1776, 1.442695
        %v1840 = vpow.pop %v1839
        %v1841 = vadd.f32 %v1778, 1.0
        %v1842 = vadd.f32 %v1780, 1.0
        %v1843 = vadd.f32 %v1782, 1.0
        %v1844 = vadd.f32 %v1784, 1.0
        %v1845 = vadd.f32 %v1786, 1.0
        %v1846 = vadd.f32 %v1788, 1.0
        %v1847 = vadd.f32 %v1790, 1.0
        %v1848 = vadd.f32 %v1792, 1.0
        %v1849 = vadd.f32 %v1794, 1.0
        %v1850 = vadd.f32 %v1796, 1.0
        %v1851 = vadd.f32 %v1798, 1.0
        %v1852 = vadd.f32 %v1800, 1.0
        %v1853 = vadd.f32 %v1802, 1.0
        %v1854 = vadd.f32 %v1804, 1.0
        %v1855 = vadd.f32 %v1806, 1.0
        %v1856 = vadd.f32 %v1808, 1.0
        %v1857 = vadd.f32 %v1810, 1.0
        %v1858 = vadd.f32 %v1812, 1.0
        %v1859 = vadd.f32 %v1814, 1.0
        %v1860 = vadd.f32 %v1816, 1.0
        %v1861 = vadd.f32 %v1818, 1.0
        %v1862 = vadd.f32 %v1820, 1.0
        %v1863 = vadd.f32 %v1822, 1.0
        %v1864 = vadd.f32 %v1824, 1.0
        %v1865 = vadd.f32 %v1826, 1.0
        %v1866 = vadd.f32 %v1828, 1.0
        %v1867 = vadd.f32 %v1830, 1.0
        %v1868 = vadd.f32 %v1832, 1.0
        %v1869 = vadd.f32 %v1834, 1.0
        %v1870 = vadd.f32 %v1836, 1.0
        %v1871 = vadd.f32 %v1838, 1.0
        %v1872 = vadd.f32 %v1840, 1.0
        %v1873 = vrcp.pop %v1841
        %v1874 = vmul.f32 1.0, %v1873
        %v1875 = vrcp.pop %v1842
        %v1876 = vmul.f32 1.0, %v1875
        %v1877 = vrcp.pop %v1843
        %v1878 = vmul.f32 1.0, %v1877
        %v1879 = vrcp.pop %v1844
        %v1880 = vmul.f32 1.0, %v1879
        %v1881 = vrcp.pop %v1845
        %v1882 = vmul.f32 1.0, %v1881
        %v1883 = vrcp.pop %v1846
        %v1884 = vmul.f32 1.0, %v1883
        %v1885 = vrcp.pop %v1847
        %v1886 = vmul.f32 1.0, %v1885
        %v1887 = vrcp.pop %v1848
        %v1888 = vmul.f32 1.0, %v1887
        %v1889 = vrcp.pop %v1849
        %v1890 = vmul.f32 1.0, %v1889
        %v1891 = vrcp.pop %v1850
        %v1892 = vmul.f32 1.0, %v1891
        %v1893 = vrcp.pop %v1851
        %v1894 = vmul.f32 1.0, %v1893
        %v1895 = vrcp.pop %v1852
        %v1896 = vmul.f32 1.0, %v1895
        %v1897 = vrcp.pop %v1853
        %v1898 = vmul.f32 1.0, %v1897
        %v1899 = vrcp.pop %v1854
        %v1900 = vmul.f32 1.0, %v1899
        %v1901 = vrcp.pop %v1855
        %v1902 = vmul.f32 1.0, %v1901
        %v1903 = vrcp.pop %v1856
        %v1904 = vmul.f32 1.0, %v1903
        %v1905 = vrcp.pop %v1857
        %v1906 = vmul.f32 1.0, %v1905
        %v1907 = vrcp.pop %v1858
        %v1908 = vmul.f32 1.0, %v1907
        %v1909 = vrcp.pop %v1859
        %v1910 = vmul.f32 1.0, %v1909
        %v1911 = vrcp.pop %v1860
        %v1912 = vmul.f32 1.0, %v1911
        %v1913 = vrcp.pop %v1861
        %v1914 = vmul.f32 1.0, %v1913
        %v1915 = vrcp.pop %v1862
        %v1916 = vmul.f32 1.0, %v1915
        %v1917 = vrcp.pop %v1863
        %v1918 = vmul.f32 1.0, %v1917
        %v1919 = vrcp.pop %v1864
        %v1920 = vmul.f32 1.0, %v1919
        %v1921 = vrcp.pop %v1865
        %v1922 = vmul.f32 1.0, %v1921
        %v1923 = vrcp.pop %v1866
        %v1924 = vmul.f32 1.0, %v1923
        %v1925 = vrcp.pop %v1867
        %v1926 = vmul.f32 1.0, %v1925
        %v1927 = vrcp.pop %v1868
        %v1928 = vmul.f32 1.0, %v1927
        %v1929 = vrcp.pop %v1869
        %v1930 = vmul.f32 1.0, %v1929
        %v1931 = vrcp.pop %v1870
        %v1932 = vmul.f32 1.0, %v1931
        %v1933 = vrcp.pop %v1871
        %v1934 = vmul.f32 1.0, %v1933
        %v1935 = vrcp.pop %v1872
        %v1936 = vmul.f32 1.0, %v1935
        %v1937 = vmul.f32 %v1713, %v1874
        %v1938 = vmul.f32 %v1714, %v1876
        %v1939 = vmul.f32 %v1715, %v1878
        %v1940 = vmul.f32 %v1716, %v1880
        %v1941 = vmul.f32 %v1717, %v1882
        %v1942 = vmul.f32 %v1718, %v1884
        %v1943 = vmul.f32 %v1719, %v1886
        %v1944 = vmul.f32 %v1720, %v1888
        %v1945 = vmul.f32 %v1721, %v1890
        %v1946 = vmul.f32 %v1722, %v1892
        %v1947 = vmul.f32 %v1723, %v1894
        %v1948 = vmul.f32 %v1724, %v1896
        %v1949 = vmul.f32 %v1725, %v1898
        %v1950 = vmul.f32 %v1726, %v1900
        %v1951 = vmul.f32 %v1727, %v1902
        %v1952 = vmul.f32 %v1728, %v1904
        %v1953 = vmul.f32 %v1729, %v1906
        %v1954 = vmul.f32 %v1730, %v1908
        %v1955 = vmul.f32 %v1731, %v1910
        %v1956 = vmul.f32 %v1732, %v1912
        %v1957 = vmul.f32 %v1733, %v1914
        %v1958 = vmul.f32 %v1734, %v1916
        %v1959 = vmul.f32 %v1735, %v1918
        %v1960 = vmul.f32 %v1736, %v1920
        %v1961 = vmul.f32 %v1737, %v1922
        %v1962 = vmul.f32 %v1738, %v1924
        %v1963 = vmul.f32 %v1739, %v1926
        %v1964 = vmul.f32 %v1740, %v1928
        %v1965 = vmul.f32 %v1741, %v1930
        %v1966 = vmul.f32 %v1742, %v1932
        %v1967 = vmul.f32 %v1743, %v1934
        %v1968 = vmul.f32 %v1744, %v1936
        %v1969 = vld [vmem:[#allocation10] sm:$0x1]
        %1970 = vmatprep.subr.mxu0 0.0
        %1971 = vmatpush1.xpose.msra.mxu0 %v1952
        %1972 = vmatprep.subr.mxu0 0.0
        %1973 = vmatpush1.xpose.msra.mxu0 %v1951
        %1974 = vmatprep.subr.mxu0 0.0
        %1975 = vmatpush1.xpose.msra.mxu0 %v1950
        %1976 = vmatprep.subr.mxu0 0.0
        %1977 = vmatpush1.xpose.msra.mxu0 %v1949
        %1978 = vmatprep.subr.mxu0 0.0
        %1979 = vmatpush1.xpose.msra.mxu0 %v1948
        %1980 = vmatprep.subr.mxu0 0.0
        %1981 = vmatpush1.xpose.msra.mxu0 %v1947
        %1982 = vmatprep.subr.mxu0 0.0
        %1983 = vmatpush1.xpose.msra.mxu0 %v1946
        %1984 = vmatprep.subr.mxu0 0.0
        %1985 = vmatpush1.xpose.msra.mxu0 %v1945
        %1986 = vmatprep.subr.mxu0 0.0
        %1987 = vmatpush1.xpose.msra.mxu0 %v1944
        %1988 = vmatprep.subr.mxu0 0.0
        %1989 = vmatpush1.xpose.msra.mxu0 %v1943
        %1990 = vmatprep.subr.mxu0 0.0
        %1991 = vmatpush1.xpose.msra.mxu0 %v1942
        %1992 = vmatprep.subr.mxu0 0.0
        %1993 = vmatpush1.xpose.msra.mxu0 %v1941
        %1994 = vmatprep.subr.mxu0 0.0
        %1995 = vmatpush1.xpose.msra.mxu0 %v1940
        %1996 = vmatprep.subr.mxu0 0.0
        %1997 = vmatpush1.xpose.msra.mxu0 %v1939
        %1998 = vmatprep.subr.mxu0 0.0
        %1999 = vmatpush1.xpose.msra.mxu0 %v1938
        %2000 = vmatprep.subr.mxu0 0.0
        %2001 = vmatpush1.xpose.msra.mxu0 %v1937
        %2002 = vmatprep.subr.mxu0 0.0
        %2003 = vmatpush2.xpose.msra.mxu0 %v1968
        %2004 = vmatprep.subr.mxu0 0.0
        %2005 = vmatpush2.xpose.msra.mxu0 %v1967
        %2006 = vmatprep.subr.mxu0 0.0
        %2007 = vmatpush2.xpose.msra.mxu0 %v1966
        %2008 = vmatprep.subr.mxu0 0.0
        %2009 = vmatpush2.xpose.msra.mxu0 %v1965
        %2010 = vmatprep.subr.mxu0 0.0
        %2011 = vmatpush2.xpose.msra.mxu0 %v1964
        %2012 = vmatprep.subr.mxu0 0.0
        %2013 = vmatpush2.xpose.msra.mxu0 %v1963
        %2014 = vmatprep.subr.mxu0 0.0
        %2015 = vmatpush2.xpose.msra.mxu0 %v1962
        %2016 = vmatprep.subr.mxu0 0.0
        %2017 = vmatpush2.xpose.msra.mxu0 %v1961
        %2018 = vmatprep.subr.mxu0 0.0
        %2019 = vmatpush2.xpose.msra.mxu0 %v1960
        %2020 = vmatprep.subr.mxu0 0.0
        %2021 = vmatpush2.xpose.msra.mxu0 %v1959
        %2022 = vmatprep.subr.mxu0 0.0
        %2023 = vmatpush2.xpose.msra.mxu0 %v1958
        %2024 = vmatprep.subr.mxu0 0.0
        %2025 = vmatpush2.xpose.msra.mxu0 %v1957
        %2026 = vmatprep.subr.mxu0 0.0
        %2027 = vmatpush2.xpose.msra.mxu0 %v1956
        %2028 = vmatprep.subr.mxu0 0.0
        %2029 = vmatpush2.xpose.msra.mxu0 %v1955
        %2030 = vmatprep.subr.mxu0 0.0
        %2031 = vmatpush2.xpose.msra.mxu0 %v1954
        %2032 = vmatprep.subr.mxu0 0.0
        %2033 = vmatpush2.xpose.msra.mxu0 %v1953
        %2034 = vmatprep.mubr.f32.mxu0 0.0
        %2035 = vmatmul.mubr.f32.gmra.mxu0 %v1969
        %v2036 = vpop.f32.mrf.mxu0
        %v2037 = vadd.f32 0.0, %v2036
        %v2038 = vpop.f32.mrf.mxu0
        %v2039 = vadd.f32 0.0, %v2038
        %2040 = vdwg.mxu0
        %v2041 = vlaneseq
        %v2042 = vand.u32 %v2041, 127
        %v2043 = vadd.s32 %v2042, 128
        %v2044 = vadd.s32 %v482, %v2042
        %v2045 = vadd.s32 %v482, %v2043
        %vm2046 = vcmp.lt.s32.totalorder %v2044, 640
        %vm2047 = vcmp.lt.s32.totalorder %v2045, 640
        %v2048 = vsel %vm2046, %v2037, -1e+30
        %v2049 = vsel %vm2047, %v2039, -1e+30
        %v2052 = vcombine.low %v2048, %v2049
        %v2054 = vunpack.c.l.s4 1966171168
        %v2055 = vunpack.c.0.s8 %v2054
        %v2056 = vlaneseq
        %v2057 = vshrl.u32 %v2056, 7
        %v2058 = vsub.s32 %v2055, %v2057
        %v2059 = vrot.slane %v2052, %v2058
        %v2061 = vunpack.c.l.s4 1966171168
        %v2062 = vunpack.c.0.s8 %v2061
        %v2063 = vlaneseq
        %v2064 = vshrl.u32 %v2063, 7
        %v2065 = vsub.s32 %v2062, %v2064
        %v2066 = vrot.slane %v2059, %v2065
        %v2068 = vlaneseq
        %vm2069 = vcmp.ge.s32.totalorder %v2068, 0
        %vm2070 = vcmp.lt.s32.totalorder %v2068, 256
        %vm2071 = vmand %vm2069, %vm2070
        %2072 = vst.msk [vmem:[%s424] sm:$0x3] %vm2071, %v2066
        %vm2073 = vcmask 1040384
        %v2074 = vsel %vm2073, %v2048, -inf
        %v2075 = vsel %vm2073, %v2049, -inf
        %v2076 = vmax.f32 %v2074, %v2075
        %2077 = vmax.xlane.f32.xlu0 %v2076
        %v2078 = vpop.xlane.xlu0 %2077
        %v2079 = vld [vmem:[#allocation17] sm:$0x1]
        %v2080 = vmax.f32 %v2079, %v2078
        %v2081 = vsub.f32 %v2079, %v2080
        %v2082 = vmul.f32 %v2081, 1.442695
        %v2083 = vpow.pop %v2082
        %2085 = vset.pattern.permute.xlu0 0
        %2086 = vperm.xlu0 %2085, %v2080
        %v2087 = vpop.permute.xlu0 %2086
        %v2089 = vlaneseq
        %v2090 = vshrl.u32 %v2089, 7
        %v2091 = vsub.s32 0, %v2090
        %v2092 = vrot.slane %v2087, %v2091
        %v2093 = vsub.f32 %v2048, %v2092
        %v2094 = vsub.f32 %v2049, %v2092
        %v2095 = vmul.f32 %v2093, 1.442695
        %v2096 = vpow.pop %v2095
        %v2097 = vmul.f32 %v2094, 1.442695
        %v2098 = vpow.pop %v2097
        %v2099 = vld [vmem:[#allocation18] sm:$0x1]
        %v2100 = vmul.f32 %v2083, %v2099
        %v2101 = vsel %vm2073, %v2096, 0.0
        %v2102 = vsel %vm2073, %v2098, 0.0
        %v2103 = vadd.f32 %v2101, %v2102
        %2104 = vadd.xlane.f32.xlu0 %v2103
        %v2105 = vpop.xlane.xlu0 %2104
        %v2106 = vadd.f32 %v2100, %v2105
        %vm2107 = vcmask 0
        %2108 = vst.msk [vmem:[#allocation18] sm:$0x1] %vm2107, %v2106
        %v2109 = vld [vmem:[#allocation2] sm:$0xf]
        %2111 = vset.pattern.permute.xlu0 0
        %2112 = vperm.xlu0 %2111, %v2083
        %v2113 = vpop.permute.xlu0 %2112
        %v2115 = vlaneseq
        %v2116 = vshrl.u32 %v2115, 7
        %v2117 = vsub.s32 0, %v2116
        %v2118 = vrot.slane %v2113, %v2117
        %v2119 = vmul.f32 %v2118, %v2109
        %2120 = vmatprep.subr.mxu0 %v800
        %2121 = vmatpush1.msra.mxu0 %v799
        %2122 = vmatprep.subr.mxu0 %v796
        %2123 = vmatpush1.msra.mxu0 %v795
        %2124 = vmatprep.subr.mxu0 %v792
        %2125 = vmatpush1.msra.mxu0 %v791
        %2126 = vmatprep.subr.mxu0 %v788
        %2127 = vmatpush1.msra.mxu0 %v787
        %2128 = vmatprep.subr.mxu0 %v784
        %2129 = vmatpush1.msra.mxu0 %v783
        %2130 = vmatprep.subr.mxu0 %v780
        %2131 = vmatpush1.msra.mxu0 %v779
        %2132 = vmatprep.subr.mxu0 %v776
        %2133 = vmatpush1.msra.mxu0 %v775
        %2134 = vmatprep.subr.mxu0 %v772
        %2135 = vmatpush1.msra.mxu0 %v771
        %2136 = vmatprep.subr.mxu0 %v768
        %2137 = vmatpush1.msra.mxu0 %v767
        %2138 = vmatprep.subr.mxu0 %v764
        %2139 = vmatpush1.msra.mxu0 %v763
        %2140 = vmatprep.subr.mxu0 %v760
        %2141 = vmatpush1.msra.mxu0 %v759
        %2142 = vmatprep.subr.mxu0 %v756
        %2143 = vmatpush1.msra.mxu0 %v755
        %2144 = vmatprep.subr.mxu0 %v752
        %2145 = vmatpush1.msra.mxu0 %v751
        %2146 = vmatprep.subr.mxu0 %v748
        %2147 = vmatpush1.msra.mxu0 %v747
        %2148 = vmatprep.subr.mxu0 %v744
        %2149 = vmatpush1.msra.mxu0 %v743
        %2150 = vmatprep.subr.mxu0 %v740
        %2151 = vmatpush1.msra.mxu0 %v739
        %2152 = vmatprep.subr.mxu0 %v864
        %2153 = vmatpush2.msra.mxu0 %v863
        %2154 = vmatprep.subr.mxu0 %v860
        %2155 = vmatpush2.msra.mxu0 %v859
        %2156 = vmatprep.subr.mxu0 %v856
        %2157 = vmatpush2.msra.mxu0 %v855
        %2158 = vmatprep.subr.mxu0 %v852
        %2159 = vmatpush2.msra.mxu0 %v851
        %2160 = vmatprep.subr.mxu0 %v848
        %2161 = vmatpush2.msra.mxu0 %v847
        %2162 = vmatprep.subr.mxu0 %v844
        %2163 = vmatpush2.msra.mxu0 %v843
        %2164 = vmatprep.subr.mxu0 %v840
        %2165 = vmatpush2.msra.mxu0 %v839
        %2166 = vmatprep.subr.mxu0 %v836
        %2167 = vmatpush2.msra.mxu0 %v835
        %2168 = vmatprep.subr.mxu0 %v832
        %2169 = vmatpush2.msra.mxu0 %v831
        %2170 = vmatprep.subr.mxu0 %v828
        %2171 = vmatpush2.msra.mxu0 %v827
        %2172 = vmatprep.subr.mxu0 %v824
        %2173 = vmatpush2.msra.mxu0 %v823
        %2174 = vmatprep.subr.mxu0 %v820
        %2175 = vmatpush2.msra.mxu0 %v819
        %2176 = vmatprep.subr.mxu0 %v816
        %2177 = vmatpush2.msra.mxu0 %v815
        %2178 = vmatprep.subr.mxu0 %v812
        %2179 = vmatpush2.msra.mxu0 %v811
        %2180 = vmatprep.subr.mxu0 %v808
        %2181 = vmatpush2.msra.mxu0 %v807
        %2182 = vmatprep.subr.mxu0 %v804
        %2183 = vmatpush2.msra.mxu0 %v803
        %2184 = vmatprep.mubr.f32.mxu0 %v2098
        %2185 = vmatmul.mubr.f32.gmra.mxu0 %v2096
        %v2186 = vpop.f32.mrf.mxu0
        %v2187 = vadd.f32 0.0, %v2186
        %v2188 = vpop.f32.mrf.mxu0
        %v2189 = vadd.f32 0.0, %v2188
        %2190 = vdwg.mxu0
        %2191 = vmatprep.subr.mxu0 %v802
        %2192 = vmatpush1.msra.mxu0 %v801
        %2193 = vmatprep.subr.mxu0 %v798
        %2194 = vmatpush1.msra.mxu0 %v797
        %2195 = vmatprep.subr.mxu0 %v794
        %2196 = vmatpush1.msra.mxu0 %v793
        %2197 = vmatprep.subr.mxu0 %v790
        %2198 = vmatpush1.msra.mxu0 %v789
        %2199 = vmatprep.subr.mxu0 %v786
        %2200 = vmatpush1.msra.mxu0 %v785
        %2201 = vmatprep.subr.mxu0 %v782
        %2202 = vmatpush1.msra.mxu0 %v781
        %2203 = vmatprep.subr.mxu0 %v778
        %2204 = vmatpush1.msra.mxu0 %v777
        %2205 = vmatprep.subr.mxu0 %v774
        %2206 = vmatpush1.msra.mxu0 %v773
        %2207 = vmatprep.subr.mxu0 %v770
        %2208 = vmatpush1.msra.mxu0 %v769
        %2209 = vmatprep.subr.mxu0 %v766
        %2210 = vmatpush1.msra.mxu0 %v765
        %2211 = vmatprep.subr.mxu0 %v762
        %2212 = vmatpush1.msra.mxu0 %v761
        %2213 = vmatprep.subr.mxu0 %v758
        %2214 = vmatpush1.msra.mxu0 %v757
        %2215 = vmatprep.subr.mxu0 %v754
        %2216 = vmatpush1.msra.mxu0 %v753
        %2217 = vmatprep.subr.mxu0 %v750
        %2218 = vmatpush1.msra.mxu0 %v749
        %2219 = vmatprep.subr.mxu0 %v746
        %2220 = vmatpush1.msra.mxu0 %v745
        %2221 = vmatprep.subr.mxu0 %v742
        %2222 = vmatpush1.msra.mxu0 %v741
        %2223 = vmatprep.subr.mxu0 %v866
        %2224 = vmatpush2.msra.mxu0 %v865
        %2225 = vmatprep.subr.mxu0 %v862
        %2226 = vmatpush2.msra.mxu0 %v861
        %2227 = vmatprep.subr.mxu0 %v858
        %2228 = vmatpush2.msra.mxu0 %v857
        %2229 = vmatprep.subr.mxu0 %v854
        %2230 = vmatpush2.msra.mxu0 %v853
        %2231 = vmatprep.subr.mxu0 %v850
        %2232 = vmatpush2.msra.mxu0 %v849
        %2233 = vmatprep.subr.mxu0 %v846
        %2234 = vmatpush2.msra.mxu0 %v845
        %2235 = vmatprep.subr.mxu0 %v842
        %2236 = vmatpush2.msra.mxu0 %v841
        %2237 = vmatprep.subr.mxu0 %v838
        %2238 = vmatpush2.msra.mxu0 %v837
        %2239 = vmatprep.subr.mxu0 %v834
        %2240 = vmatpush2.msra.mxu0 %v833
        %2241 = vmatprep.subr.mxu0 %v830
        %2242 = vmatpush2.msra.mxu0 %v829
        %2243 = vmatprep.subr.mxu0 %v826
        %2244 = vmatpush2.msra.mxu0 %v825
        %2245 = vmatprep.subr.mxu0 %v822
        %2246 = vmatpush2.msra.mxu0 %v821
        %2247 = vmatprep.subr.mxu0 %v818
        %2248 = vmatpush2.msra.mxu0 %v817
        %2249 = vmatprep.subr.mxu0 %v814
        %2250 = vmatpush2.msra.mxu0 %v813
        %2251 = vmatprep.subr.mxu0 %v810
        %2252 = vmatpush2.msra.mxu0 %v809
        %2253 = vmatprep.subr.mxu0 %v806
        %2254 = vmatpush2.msra.mxu0 %v805
        %2255 = vmatprep.mubr.f32.mxu0 %v2098
        %2256 = vmatmul.mubr.f32.gmra.mxu0 %v2096
        %v2257 = vpop.f32.mrf.mxu0
        %v2258 = vadd.f32 0.0, %v2257
        %v2259 = vpop.f32.mrf.mxu0
        %v2260 = vadd.f32 0.0, %v2259
        %2261 = vdwg.mxu0
        %v2266 = vcombine.low %v2187, %v2189
        %v2267 = vcombine.low %v2258, %v2260
        %v2269 = vunpack.c.l.s4 1966171168
        %v2270 = vunpack.c.0.s8 %v2269
        %v2271 = vlaneseq
        %v2272 = vshrl.u32 %v2271, 7
        %v2273 = vsub.s32 %v2270, %v2272
        %v2274 = vrot.slane %v2266, %v2273
        %v2276 = vunpack.c.l.s4 1966171168
        %v2277 = vunpack.c.0.s8 %v2276
        %v2278 = vlaneseq
        %v2279 = vshrl.u32 %v2278, 7
        %v2280 = vsub.s32 %v2277, %v2279
        %v2281 = vrot.slane %v2267, %v2280
        %v2282 = vcombine.low %v2274, %v2281
        %v2284 = vunpack.c.l.s4 1966171168
        %v2285 = vunpack.c.0.s8 %v2284
        %v2286 = vlaneseq
        %v2287 = vshrl.u32 %v2286, 7
        %v2288 = vsub.s32 %v2285, %v2287
        %v2289 = vrot.slane %v2282, %v2288
        %v2291 = vadd.f32 %v2119, %v2289
        %vm2292 = vcmp.lt.s32.totalorder %v2068, 512
        %vm2293 = vmand %vm2069, %vm2292
        %2294 = vst.msk [vmem:[#allocation2] sm:$0xf] %vm2293, %v2291
        %2295 = vst.msk [vmem:[#allocation17] sm:$0x1] %vm2107, %v2080
        %p2296 = scmp.eq.s32.totalorder %s32, 2
        // Predicated region
        $region69: #{tpu_custom_call.1} parent=43 // pred_check
          %p2297 = pneg %p2296
        $region70: #{tpu_custom_call.1} parent=43 // pred_check_branch
          %2299 = sbr.rel (%p2297) target = $region72
        $region71: #{tpu_custom_call.1} parent=43 // pred_region
          %v2300 = vld [vmem:[#allocation2] sm:$0xf]
          %v2301 = vld [vmem:[#allocation18] sm:$0x1]
          %2303 = vset.pattern.permute.xlu0 0
          %2304 = vperm.xlu0 %2303, %v2301
          %v2305 = vpop.permute.xlu0 %2304
          %v2307 = vlaneseq
          %v2308 = vshrl.u32 %v2307, 7
          %v2309 = vsub.s32 0, %v2308
          %v2310 = vrot.slane %v2305, %v2309
          %v2311 = vrcp.pop %v2310
          %v2312 = vmul.f32 %v2300, %v2311
          %v2313 = vld [vmem:[#allocation12] sm:$0xf]
          %v2314 = vmul.f32 %v2312, %v2313
          %v2316 = vlaneseq
          %v2317 = vshrl.u32 %v2316, 7
          %v2318 = vsub.s32 0, %v2317
          %v2319 = vrot.slane %v2314, %v2318
          %v2320 = vlaneseq
          %v2321 = vshrl.u32 %v2320, 7
          %v2322 = vsub.s32 1, %v2321
          %v2323 = vrot.slane %v2314, %v2322
          %v2324 = vlaneseq
          %v2325 = vshrl.u32 %v2324, 7
          %v2326 = vsub.s32 2, %v2325
          %v2327 = vrot.slane %v2314, %v2326
          %v2328 = vlaneseq
          %v2329 = vshrl.u32 %v2328, 7
          %v2330 = vsub.s32 3, %v2329
          %v2331 = vrot.slane %v2314, %v2330
          %v2336 = vsel %vm2073, %v2319, 0.0
          %v2337 = vsel %vm2073, %v2323, 0.0
          %v2338 = vadd.f32 %v2336, %v2337
          %v2339 = vsel %vm2073, %v2327, 0.0
          %v2340 = vadd.f32 %v2338, %v2339
          %v2341 = vsel %vm2073, %v2331, 0.0
          %v2342 = vadd.f32 %v2340, %v2341
          %2343 = vadd.xlane.f32.xlu0 %v2342
          %v2344 = vpop.xlane.xlu0 %2343
          %v2345 = vld [vmem:[#allocation3] sm:$0x1]
          %v2346 = vadd.f32 %v2344, %v2345
          %v2347 = vxor.u32 %v2346, 2147483648
          %v2348 = vmul.f32 %v2347, 1.442695
          %v2349 = vpow.pop %v2348
          %v2350 = vadd.f32 %v2349, 1.0
          %v2351 = vrcp.pop %v2350
          %v2352 = vmul.f32 1.0, %v2351
          %2353 = vst.msk [vmem:[#allocation13] sm:$0x1] %vm2107, %v2352
          %vm2354 = vcmp.ge.f32.partialorder %v2352, 0.5
          %v2355 = vsel %vm2354, 1, 0
          %v2356 = vcvt.s32.f32 %v2355
          %2357 = vst.msk [vmem:[#allocation14] sm:$0x1] %vm2107, %v2356
        $region72: #{tpu_custom_call.1} parent=43 // pred_fallthru
          _
        %s2358 = sand.u32 %s32, 1
        %s2359 = scalar_lea.sflag [#allocation6], %s2358
        %s2360 = sand.u32 %s213, 1
        %s2361 = smul.addr %s2360, 2
        %s2362 = scalar_lea.vmem [#allocation16], %s2361
        // Predicated region
        $region73: #{tpu_custom_call.1} parent=43 // pred_check
          %p2363 = pneg %p176
        $region74: #{tpu_custom_call.1} parent=43 // pred_check_branch
          %2365 = sbr.rel (%p2363) target = $region76
        $region75: #{tpu_custom_call.1} parent=43 // pred_region
          %s2367 = ssub.s32 16, 16
          %2368 = vsyncadd [#allocation6], %s2367
          %s2370 = sshll.u32 [#allocation13], 4
          %s2371 = int_to_ptr.vmem [resolvable:$true] %s2370
          %2373 = dma.vmem_to_hbm [thread:$0]  %s2371, 16, %s6, [#allocation6]
        $region76: #{tpu_custom_call.1} parent=43 // pred_fallthru
          _
        // Predicated region
        $region77: #{tpu_custom_call.1} parent=43 // pred_check
          %p2374 = pneg %p197
        $region78: #{tpu_custom_call.1} parent=43 // pred_check_branch
          %2376 = sbr.rel (%p2374) target = $region80
        $region79: #{tpu_custom_call.1} parent=43 // pred_region
          %s2378 = ssub.s32 16, 16
          %2379 = vsyncadd [#allocation15], %s2378
          %s2381 = sshll.u32 [#allocation14], 4
          %s2382 = int_to_ptr.vmem [resolvable:$true] %s2381
          %2384 = dma.vmem_to_hbm [thread:$0]  %s2382, 16, %s7, [#allocation15]
        $region80: #{tpu_custom_call.1} parent=43 // pred_fallthru
          _
        // Predicated region
        $region81: #{tpu_custom_call.1} parent=43 // pred_check
          %p2385 = pneg %p223
        $region82: #{tpu_custom_call.1} parent=43 // pred_check_branch
          %2387 = sbr.rel (%p2385) target = $region84
        $region83: #{tpu_custom_call.1} parent=43 // pred_region
          %s2388 = smul.u32 2, %s32
          %s2390 = ssub.s32 32, 32
          %2391 = vsyncadd %s2359, %s2390
          %s2392 = smul.addr %s2388, 16
          %s2393 = scalar_lea.hbm %s8, %s2392
          %s2395 = sshll.u32 %s2362, 4
          %s2396 = int_to_ptr.vmem [resolvable:$true] %s2395
          %2398 = dma.vmem_to_hbm [thread:$0]  %s2396, 32, %s2393, %s2359
        $region84: #{tpu_custom_call.1} parent=43 // pred_fallthru
          _
        // Predicated region
        $region85: #{tpu_custom_call.1} parent=43 // pred_check
          %p2399 = pneg %p244
        $region86: #{tpu_custom_call.1} parent=43 // pred_check_branch
          %2401 = sbr.rel (%p2399) target = $region88
        $region87: #{tpu_custom_call.1} parent=43 // pred_region
          %s2403 = ssub.s32 16, 16
          %2404 = vsyncadd [#allocation15], %s2403
          %s2406 = sshll.u32 [#allocation17], 4
          %s2407 = int_to_ptr.vmem [resolvable:$true] %s2406
          %2409 = dma.vmem_to_hbm [thread:$0]  %s2407, 16, %s9, [#allocation15]
        $region88: #{tpu_custom_call.1} parent=43 // pred_fallthru
          _
        // Predicated region
        $region89: #{tpu_custom_call.1} parent=43 // pred_check
          %p2410 = pneg %p265
        $region90: #{tpu_custom_call.1} parent=43 // pred_check_branch
          %2412 = sbr.rel (%p2410) target = $region92
        $region91: #{tpu_custom_call.1} parent=43 // pred_region
          %s2414 = ssub.s32 16, 16
          %2415 = vsyncadd [#allocation19], %s2414
          %s2417 = sshll.u32 [#allocation18], 4
          %s2418 = int_to_ptr.vmem [resolvable:$true] %s2417
          %2420 = dma.vmem_to_hbm [thread:$0]  %s2418, 16, %s10, [#allocation19]
        $region92: #{tpu_custom_call.1} parent=43 // pred_fallthru
          _
        // Predicated region
        $region93: #{tpu_custom_call.1} parent=43 // pred_check
          %p2421 = pneg %p176
        $region94: #{tpu_custom_call.1} parent=43 // pred_check_branch
          %2423 = sbr.rel (%p2421) target = $region96
        $region95: #{tpu_custom_call.1} parent=43 // pred_region
          %2424 = dma.done [#allocation6], 16
        $region96: #{tpu_custom_call.1} parent=43 // pred_fallthru
          _
        // Predicated region
        $region97: #{tpu_custom_call.1} parent=43 // pred_check
          %p2425 = pneg %p197
        $region98: #{tpu_custom_call.1} parent=43 // pred_check_branch
          %2427 = sbr.rel (%p2425) target = $region100
        $region99: #{tpu_custom_call.1} parent=43 // pred_region
          %2428 = dma.done [#allocation15], 16
        $region100: #{tpu_custom_call.1} parent=43 // pred_fallthru
          _
        // Predicated region
        $region101: #{tpu_custom_call.1} parent=43 // pred_check
          %p2429 = pneg %p244
        $region102: #{tpu_custom_call.1} parent=43 // pred_check_branch
          %2431 = sbr.rel (%p2429) target = $region104
        $region103: #{tpu_custom_call.1} parent=43 // pred_region
          %2432 = dma.done [#allocation15], 16
        $region104: #{tpu_custom_call.1} parent=43 // pred_fallthru
          _
        // Predicated region
        $region105: #{tpu_custom_call.1} parent=43 // pred_check
          %p2433 = pneg %p265
        $region106: #{tpu_custom_call.1} parent=43 // pred_check_branch
          %2435 = sbr.rel (%p2433) target = $region108
        $region107: #{tpu_custom_call.1} parent=43 // pred_region
          %2436 = dma.done [#allocation19], 16
        $region108: #{tpu_custom_call.1} parent=43 // pred_fallthru
          _
      $region44: #{tpu_custom_call.1} parent=5 // pred_fallthru
        _
      %p2437 = scmp.le.s32.totalorder 2, %s27
      // Predicated region
      $region109: #{tpu_custom_call.1} parent=5 // pred_check
        %p2438 = pneg %p2437
      $region110: #{tpu_custom_call.1} parent=5 // pred_check_branch
        %2440 = sbr.rel (%p2438) target = $region112
      $region111: #{tpu_custom_call.1} parent=5 // pred_region
        %s2441 = ssub.s32 %s27, 2
        // Predicated region
        $region113: #{tpu_custom_call.1} parent=111 // pred_check
          %p2442 = pneg %p229
        $region114: #{tpu_custom_call.1} parent=111 // pred_check_branch
          %2444 = sbr.rel (%p2442) target = $region116
        $region115: #{tpu_custom_call.1} parent=111 // pred_region
          %s2445 = sand.u32 %s33, 1
          %s2446 = scalar_lea.sflag [#allocation6], %s2445
          %s2447 = sand.u32 %s214, 1
          %s2448 = smul.addr %s2447, 2
          %s2449 = scalar_lea.vmem [#allocation16], %s2448
          %2450 = dma.done %s2446, 32
        $region116: #{tpu_custom_call.1} parent=111 // pred_fallthru
          _
      $region112: #{tpu_custom_call.1} parent=5 // pred_fallthru
        _
    $region6: #{tpu_custom_call.1} parent=1 // loop_footer
      %s31 = sadd.s32 1, %s27
    $region7: #{tpu_custom_call.1} parent=1 // loop_footer_branch
      %26 = sbr.rel target = $region3
    $region8: #{tpu_custom_call.1} parent=1 // loop_exit
      _
    %2451 = vsyncpa [#allocation5], 1
    %s2452 = scalar_lea.sflag [#allocation5], 1
    %2453 = vsyncpa %s2452, 1
    %2454 = vsyncpa [#allocation8], 1
    %2455 = vsyncpa [#allocation11], 1
    %2456 = vsyncpa [#allocation6], 1
    %s2457 = scalar_lea.sflag [#allocation6], 1
    %2458 = vsyncpa %s2457, 1
    %2459 = vsyncpa [#allocation15], 1
    %2460 = vsyncpa [#allocation19], 1

</llo_original>
